<compile_context>
chip_gen: v6e
topology: v6e:2x2x1
jax: 0.10.0
libtpu: 0.0.40
codegen_flags: <defaults>
</compile_context>

<pallas_src>
import jax
import jax.numpy as jnp
from jax.experimental import pallas as pl
from jax.experimental.pallas import tpu as pltpu


def _attentioner_kernel(x2_ref, h0_ref, c0_ref,
                        wi2_ref, bcat_ref, whc_ref,
                        l1w_ref, l1b_ref, l2w_ref, l2b_ref,
                        out_ref,
                        xw_ref, hs_ref):
    T = x2_ref.shape[0]
    H2x = h0_ref.shape[1]          # 2H
    H = H2x // 2

    # ---- hoisted input projection: one MXU-efficient matmul for both directions
    # row t of xw: [i_f(x_t), i_b(x_rev_t), f_f, f_b, o_f, o_b, g_f, g_b] + biases
    xw_ref[...] = (jnp.dot(x2_ref[...], wi2_ref[...],
                           preferred_element_type=jnp.float32)
                   + bcat_ref[...])

    # ---- fused bidirectional recurrence, state carried in registers
    def step(t, carry):
        h_cat, c_cat = carry                                   # each (1, 2H)
        gates = xw_ref[pl.ds(t, 1), :] + jnp.dot(
            h_cat, whc_ref[...], preferred_element_type=jnp.float32)  # (1, 8H)

        sig = jax.nn.sigmoid(gates[:, 0:6 * H])                # [i_cat, f_cat, o_cat]
        i_c = sig[:, 0:2 * H]
        f_c = sig[:, 2 * H:4 * H]
        o_c = sig[:, 4 * H:6 * H]
        g_c = jnp.tanh(gates[:, 6 * H:8 * H])                  # [g_fwd, g_bwd]

        c_new = f_c * c_cat + i_c * g_c
        h_new = o_c * jnp.tanh(c_new)                          # [h_fwd, h_bwd]

        # forward hidden -> output row t, backward hidden -> output row T-1-t
        hs_ref[pl.ds(t, 1), pl.ds(0, H)] = h_new[:, 0:H]
        hs_ref[pl.ds(T - 1 - t, 1), pl.ds(H, H)] = h_new[:, H:2 * H]
        return h_new, c_new

    jax.lax.fori_loop(0, T, step, (h0_ref[...], c0_ref[...]), unroll=True)

    # ---- attention head: linear -> tanh -> linear -> softmax over time
    hcat = hs_ref[...]                                          # (T, 2H)
    z = jnp.tanh(jnp.dot(hcat, l1w_ref[...],
                         preferred_element_type=jnp.float32) + l1b_ref[...])  # (T, H/2)
    # (T, H/2) x (H/2,) -> VPU multiply + lane reduce instead of an N=1 MXU matmul
    logits = jnp.sum(z * l2w_ref[...], axis=1, keepdims=True) + l2b_ref[...]  # (T, 1)
    m = jnp.max(logits, axis=0, keepdims=True)
    e = jnp.exp(logits - m)
    out_ref[...] = e / jnp.sum(e, axis=0, keepdims=True)


def make_params(key, feature_size, hidden_size):
    """Deterministic synthetic parameters matching nn.LSTM / nn.Linear shapes."""
    H, F = hidden_size, feature_size
    H2 = hidden_size // 2
    ks = jax.random.split(key, 12)

    def u(k, shape, bound):
        return jax.random.uniform(k, shape, jnp.float32, -bound, bound)

    bl = 1.0 / float(jnp.sqrt(H))
    p = {
        "w_ih_f": u(ks[0], (4 * H, F), bl), "w_hh_f": u(ks[1], (4 * H, H), bl),
        "b_ih_f": u(ks[2], (4 * H,), bl),   "b_hh_f": u(ks[3], (4 * H,), bl),
        "w_ih_b": u(ks[4], (4 * H, F), bl), "w_hh_b": u(ks[5], (4 * H, H), bl),
        "b_ih_b": u(ks[6], (4 * H,), bl),   "b_hh_b": u(ks[7], (4 * H,), bl),
    }
    b1 = 1.0 / float(jnp.sqrt(2 * H))
    p["l1_w"] = u(ks[8], (H2, 2 * H), b1)
    p["l1_b"] = u(ks[9], (H2,), b1)
    b2 = 1.0 / float(jnp.sqrt(H2))
    p["l2_w"] = u(ks[10], (1, H2), b2)
    p["l2_b"] = u(ks[11], (1,), b2)
    return p


def _gate_slices(w, H):
    # PyTorch nn.LSTM gate order along rows: i, f, g, o (H rows/elements each)
    return {"i": w[0 * H:1 * H], "f": w[1 * H:2 * H],
            "g": w[2 * H:3 * H], "o": w[3 * H:4 * H]}


def attentioner_forward(x, h0, c0, params):
    T, F = x.shape
    H = h0.shape[1]
    H2 = params["l1_w"].shape[0]

    wi_f = _gate_slices(params["w_ih_f"], H)   # each (H, F)
    wi_b = _gate_slices(params["w_ih_b"], H)
    wh_f = _gate_slices(params["w_hh_f"], H)   # each (H, H)
    wh_b = _gate_slices(params["w_hh_b"], H)
    b_f = _gate_slices(params["b_ih_f"] + params["b_hh_f"], H)   # each (H,)
    b_b = _gate_slices(params["b_ih_b"] + params["b_hh_b"], H)

    # Combined, gate-interleaved layouts: column blocks (width H) ordered
    # [i_f, i_b, f_f, f_b, o_f, o_b, g_f, g_b].
    zF = jnp.zeros((F, H), jnp.float32)
    zH = jnp.zeros((H, H), jnp.float32)
    wi2_cols, whc_cols, b_cols = [], [], []
    for g in ("i", "f", "o", "g"):
        # forward block: driven by x[t] (rows 0:F of x2) and h_fwd (rows 0:H of h_cat)
        wi2_cols.append(jnp.concatenate([wi_f[g].T, zF], axis=0))   # (2F, H)
        whc_cols.append(jnp.concatenate([wh_f[g].T, zH], axis=0))   # (2H, H)
        b_cols.append(b_f[g])
        # backward block: driven by x[T-1-t] (rows F:2F) and h_bwd (rows H:2H)
        wi2_cols.append(jnp.concatenate([zF, wi_b[g].T], axis=0))
        whc_cols.append(jnp.concatenate([zH, wh_b[g].T], axis=0))
        b_cols.append(b_b[g])
    wi2 = jnp.concatenate(wi2_cols, axis=1)        # (2F, 8H)
    whc = jnp.concatenate(whc_cols, axis=1)        # (2H, 8H) block-diagonal per gate
    bcat = jnp.concatenate(b_cols)[None, :]        # (1, 8H)

    # x2 row t = [x[t], x[T-1-t]] so one matmul yields both directions' gate inputs.
    x2 = jnp.concatenate([x, x[::-1]], axis=1)     # (T, 2F)
    h0c = h0.reshape(1, 2 * H)                     # [h0_fwd, h0_bwd]
    c0c = c0.reshape(1, 2 * H)

    l1w = params["l1_w"].T                         # (2H, H/2)
    l1b = params["l1_b"][None, :]                  # (1, H/2)
    l2w = params["l2_w"]                           # (1, H/2) used as a VPU row
    l2b = params["l2_b"][None, :]                  # (1, 1)

    flops = int(2 * T * (2 * F) * (8 * H)          # input projection
                + 2 * T * (2 * H) * (8 * H)        # recurrence
                + 2 * T * (2 * H) * H2             # linear1
                + 2 * T * H2)                      # linear2 (VPU)
    transcendentals = int(T * (10 * H) + T * H2 + T)
    bytes_accessed = int(4 * (x2.size + h0c.size + c0c.size + wi2.size + bcat.size
                              + whc.size + l1w.size + l1b.size + l2w.size
                              + l2b.size + T))

    vmem = pl.BlockSpec(memory_space=pltpu.MemorySpace.VMEM)
    return pl.pallas_call(
        _attentioner_kernel,
        out_shape=jax.ShapeDtypeStruct((T, 1), jnp.float32),
        in_specs=[vmem] * 10,
        out_specs=vmem,
        scratch_shapes=[
            pltpu.VMEM((T, 8 * H), jnp.float32),   # hoisted per-step gate inputs
            pltpu.VMEM((T, 2 * H), jnp.float32),   # [h_fwd | h_bwd] hidden states
        ],
        cost_estimate=pl.CostEstimate(flops=flops,
                                      transcendentals=transcendentals,
                                      bytes_accessed=bytes_accessed),
    )(x2, h0c, c0c, wi2, bcat, whc, l1w, l1b, l2w, l2b)


def reference_forward(x, h0, c0, p):
    """Pure-JAX reference mirroring PyTorch bi-LSTM + attention head."""
    T = x.shape[0]
    H = h0.shape[1]

    def cell(x_t, h, c, w_ih, w_hh, b_ih, b_hh):
        gates = x_t @ w_ih.T + h @ w_hh.T + b_ih + b_hh
        i = jax.nn.sigmoid(gates[:H])
        f = jax.nn.sigmoid(gates[H:2 * H])
        g = jnp.tanh(gates[2 * H:3 * H])
        o = jax.nn.sigmoid(gates[3 * H:])
        c = f * c + i * g
        h = o * jnp.tanh(c)
        return h, c

    hf, cf = h0[0], c0[0]
    hb, cb = h0[1], c0[1]
    outs_f, outs_b = [], [None] * T
    for t in range(T):
        hf, cf = cell(x[t], hf, cf, p["w_ih_f"], p["w_hh_f"], p["b_ih_f"], p["b_hh_f"])
        outs_f.append(hf)
    for t in range(T - 1, -1, -1):
        hb, cb = cell(x[t], hb, cb, p["w_ih_b"], p["w_hh_b"], p["b_ih_b"], p["b_hh_b"])
        outs_b[t] = hb
    hcat = jnp.concatenate([jnp.stack(outs_f), jnp.stack(outs_b)], axis=1)   # (T, 2H)
    z = jnp.tanh(hcat @ p["l1_w"].T + p["l1_b"])
    logits = z @ p["l2_w"].T + p["l2_b"]                                      # (T, 1)
    return jax.nn.softmax(logits, axis=0)


if __name__ == "__main__":
    feature_size = 16
    hidden_size = 32
    T = 8  # sequence length after inputs.view(1, -1, feature_size)

    key = jax.random.PRNGKey(0)
    kx, kp = jax.random.split(key)
    x = jax.random.normal(kx, (T, feature_size), jnp.float32)
    # init_hidden(): zeros of shape (2, 1, hidden) -> squeeze batch dim
    h0 = jnp.zeros((2, hidden_size), jnp.float32)
    c0 = jnp.zeros((2, hidden_size), jnp.float32)
    params = make_params(kp, feature_size, hidden_size)

    out = attentioner_forward(x, h0, c0, params)
    out = jax.block_until_ready(out)

    ref = reference_forward(x, h0, c0, params)
    assert out.shape == (T, 1)
    assert jnp.allclose(jnp.sum(out), 1.0, atol=1e-4)
    assert jnp.allclose(out, ref, atol=1e-4, rtol=1e-4)
    print("KERNEL_OK")
</pallas_src>

<mosaic_0001>
module attributes {stable_mosaic.version = 11 : i64} {
  func.func @_attentioner_kernel(%arg0: memref<8x32xf32, #tpu.memory_space<vmem>>, %arg1: memref<1x64xf32, #tpu.memory_space<vmem>>, %arg2: memref<1x64xf32, #tpu.memory_space<vmem>>, %arg3: memref<32x256xf32, #tpu.memory_space<vmem>>, %arg4: memref<1x256xf32, #tpu.memory_space<vmem>>, %arg5: memref<64x256xf32, #tpu.memory_space<vmem>>, %arg6: memref<64x16xf32, #tpu.memory_space<vmem>>, %arg7: memref<1x16xf32, #tpu.memory_space<vmem>>, %arg8: memref<1x16xf32, #tpu.memory_space<vmem>>, %arg9: memref<1x1xf32, #tpu.memory_space<vmem>>, %arg10: memref<8x1xf32, #tpu.memory_space<vmem>>, %arg11: memref<8x256xf32, #tpu.memory_space<vmem>>, %arg12: memref<8x64xf32, #tpu.memory_space<vmem>>) attributes {dimension_semantics = [], scalar_prefetch = 0 : i64, scratch_operands = 2 : i64, tpu.core_type = #tpu.core_type<tc>} {
    %c0 = arith.constant 0 : index
    %c0_0 = arith.constant 0 : index
    %0 = vector.load %arg0[%c0, %c0_0] : memref<8x32xf32, #tpu.memory_space<vmem>>, vector<8x32xf32>
    %c0_1 = arith.constant 0 : index
    %c0_2 = arith.constant 0 : index
    %1 = vector.load %arg3[%c0_1, %c0_2] : memref<32x256xf32, #tpu.memory_space<vmem>>, vector<32x256xf32>
    %cst = arith.constant dense<0.000000e+00> : vector<8x256xf32>
    %2 = tpu.matmul %0, %1, %cst {dimension_numbers = #tpu.dot_dimension_numbers<[1], [0], [0], [1], [0, 0, 1, 1], [], []>} : vector<8x32xf32>, vector<32x256xf32>, vector<8x256xf32> -> vector<8x256xf32>
    %c0_3 = arith.constant 0 : index
    %c0_4 = arith.constant 0 : index
    %3 = vector.load %arg4[%c0_3, %c0_4] : memref<1x256xf32, #tpu.memory_space<vmem>>, vector<1x256xf32>
    %4 = vector.broadcast %3 : vector<1x256xf32> to vector<8x256xf32>
    %5 = arith.addf %2, %4 : vector<8x256xf32>
    %c0_5 = arith.constant 0 : index
    %c0_6 = arith.constant 0 : index
    %6 = vector.load %arg11[%c0_5, %c0_6] : memref<8x256xf32, #tpu.memory_space<vmem>>, vector<8x256xf32>
    tpu.vector_store %arg11[%c0_5, %c0_6], %5 {strides = array<i32>} : memref<8x256xf32, #tpu.memory_space<vmem>>, vector<8x256xf32>,
    %c0_7 = arith.constant 0 : index
    %c0_8 = arith.constant 0 : index
    %7 = vector.load %arg1[%c0_7, %c0_8] : memref<1x64xf32, #tpu.memory_space<vmem>>, vector<1x64xf32>
    %c0_9 = arith.constant 0 : index
    %c0_10 = arith.constant 0 : index
    %8 = vector.load %arg2[%c0_9, %c0_10] : memref<1x64xf32, #tpu.memory_space<vmem>>, vector<1x64xf32>
    %c0_i32 = arith.constant 0 : i32
    %9 = arith.index_cast %c0_i32 : i32 to index
    %c0_11 = arith.constant 0 : index
    %10 = vector.load %arg11[%9, %c0_11] : memref<8x256xf32, #tpu.memory_space<vmem>>, vector<1x256xf32>
    %c0_12 = arith.constant 0 : index
    %c0_13 = arith.constant 0 : index
    %11 = vector.load %arg5[%c0_12, %c0_13] : memref<64x256xf32, #tpu.memory_space<vmem>>, vector<64x256xf32>
    %cst_14 = arith.constant dense<0.000000e+00> : vector<1x256xf32>
    %12 = tpu.matmul %7, %11, %cst_14 {dimension_numbers = #tpu.dot_dimension_numbers<[1], [0], [0], [1], [0, 0, 1, 1], [], []>} : vector<1x64xf32>, vector<64x256xf32>, vector<1x256xf32> -> vector<1x256xf32>
    %13 = arith.addf %10, %12 : vector<1x256xf32>
    %14 = vector.extract_strided_slice %13 {offsets = [0, 0], sizes = [1, 192], strides = [1, 1]} : vector<1x256xf32> to vector<1x192xf32>
    %15 = arith.negf %14 : vector<1x192xf32>
    %16 = math.exp %15 : vector<1x192xf32>
    %cst_15 = arith.constant 1.000000e+00 : f32
    %17 = vector.broadcast %cst_15 : f32 to vector<1x192xf32>
    %18 = arith.addf %17, %16 : vector<1x192xf32>
    %19 = arith.divf %17, %18 : vector<1x192xf32>
    %20 = vector.extract_strided_slice %19 {offsets = [0, 0], sizes = [1, 64], strides = [1, 1]} : vector<1x192xf32> to vector<1x64xf32>
    %21 = vector.extract_strided_slice %19 {offsets = [0, 64], sizes = [1, 64], strides = [1, 1]} : vector<1x192xf32> to vector<1x64xf32>
    %22 = vector.extract_strided_slice %19 {offsets = [0, 128], sizes = [1, 64], strides = [1, 1]} : vector<1x192xf32> to vector<1x64xf32>
    %23 = vector.extract_strided_slice %13 {offsets = [0, 192], sizes = [1, 64], strides = [1, 1]} : vector<1x256xf32> to vector<1x64xf32>
    %24 = math.tanh %23 : vector<1x64xf32>
    %25 = arith.mulf %21, %8 : vector<1x64xf32>
    %26 = arith.mulf %20, %24 : vector<1x64xf32>
    %27 = arith.addf %25, %26 : vector<1x64xf32>
    %28 = math.tanh %27 : vector<1x64xf32>
    %29 = arith.mulf %22, %28 : vector<1x64xf32>
    %30 = vector.extract_strided_slice %29 {offsets = [0, 0], sizes = [1, 32], strides = [1, 1]} : vector<1x64xf32> to vector<1x32xf32>
    %31 = arith.index_cast %c0_i32 : i32 to index
    %c0_16 = arith.constant 0 : index
    %32 = vector.load %arg12[%31, %c0_16] : memref<8x64xf32, #tpu.memory_space<vmem>>, vector<1x32xf32>
    tpu.vector_store %arg12[%31, %c0_16], %30 {strides = array<i32>} : memref<8x64xf32, #tpu.memory_space<vmem>>, vector<1x32xf32>,
    %33 = vector.extract_strided_slice %29 {offsets = [0, 32], sizes = [1, 32], strides = [1, 1]} : vector<1x64xf32> to vector<1x32xf32>
    %c7_i32 = arith.constant 7 : i32
    %34 = arith.subi %c7_i32, %c0_i32 : i32
    %35 = arith.index_cast %34 : i32 to index
    %c32 = arith.constant 32 : index
    %36 = vector.load %arg12[%35, %c32] : memref<8x64xf32, #tpu.memory_space<vmem>>, vector<1x32xf32>
    tpu.vector_store %arg12[%35, %c32], %33 {strides = array<i32>} : memref<8x64xf32, #tpu.memory_space<vmem>>, vector<1x32xf32>,
    %c1_i32 = arith.constant 1 : i32
    %37 = arith.index_cast %c1_i32 : i32 to index
    %c0_17 = arith.constant 0 : index
    %38 = vector.load %arg11[%37, %c0_17] : memref<8x256xf32, #tpu.memory_space<vmem>>, vector<1x256xf32>
    %c0_18 = arith.constant 0 : index
    %c0_19 = arith.constant 0 : index
    %39 = vector.load %arg5[%c0_18, %c0_19] : memref<64x256xf32, #tpu.memory_space<vmem>>, vector<64x256xf32>
    %cst_20 = arith.constant dense<0.000000e+00> : vector<1x256xf32>
    %40 = tpu.matmul %29, %39, %cst_20 {dimension_numbers = #tpu.dot_dimension_numbers<[1], [0], [0], [1], [0, 0, 1, 1], [], []>} : vector<1x64xf32>, vector<64x256xf32>, vector<1x256xf32> -> vector<1x256xf32>
    %41 = arith.addf %38, %40 : vector<1x256xf32>
    %42 = vector.extract_strided_slice %41 {offsets = [0, 0], sizes = [1, 192], strides = [1, 1]} : vector<1x256xf32> to vector<1x192xf32>
    %43 = arith.negf %42 : vector<1x192xf32>
    %44 = math.exp %43 : vector<1x192xf32>
    %cst_21 = arith.constant 1.000000e+00 : f32
    %45 = vector.broadcast %cst_21 : f32 to vector<1x192xf32>
    %46 = arith.addf %45, %44 : vector<1x192xf32>
    %47 = arith.divf %45, %46 : vector<1x192xf32>
    %48 = vector.extract_strided_slice %47 {offsets = [0, 0], sizes = [1, 64], strides = [1, 1]} : vector<1x192xf32> to vector<1x64xf32>
    %49 = vector.extract_strided_slice %47 {offsets = [0, 64], sizes = [1, 64], strides = [1, 1]} : vector<1x192xf32> to vector<1x64xf32>
    %50 = vector.extract_strided_slice %47 {offsets = [0, 128], sizes = [1, 64], strides = [1, 1]} : vector<1x192xf32> to vector<1x64xf32>
    %51 = vector.extract_strided_slice %41 {offsets = [0, 192], sizes = [1, 64], strides = [1, 1]} : vector<1x256xf32> to vector<1x64xf32>
    %52 = math.tanh %51 : vector<1x64xf32>
    %53 = arith.mulf %49, %27 : vector<1x64xf32>
    %54 = arith.mulf %48, %52 : vector<1x64xf32>
    %55 = arith.addf %53, %54 : vector<1x64xf32>
    %56 = math.tanh %55 : vector<1x64xf32>
    %57 = arith.mulf %50, %56 : vector<1x64xf32>
    %58 = vector.extract_strided_slice %57 {offsets = [0, 0], sizes = [1, 32], strides = [1, 1]} : vector<1x64xf32> to vector<1x32xf32>
    %59 = arith.index_cast %c1_i32 : i32 to index
    %c0_22 = arith.constant 0 : index
    %60 = vector.load %arg12[%59, %c0_22] : memref<8x64xf32, #tpu.memory_space<vmem>>, vector<1x32xf32>
    tpu.vector_store %arg12[%59, %c0_22], %58 {strides = array<i32>} : memref<8x64xf32, #tpu.memory_space<vmem>>, vector<1x32xf32>,
    %61 = vector.extract_strided_slice %57 {offsets = [0, 32], sizes = [1, 32], strides = [1, 1]} : vector<1x64xf32> to vector<1x32xf32>
    %c7_i32_23 = arith.constant 7 : i32
    %62 = arith.subi %c7_i32_23, %c1_i32 : i32
    %63 = arith.index_cast %62 : i32 to index
    %c32_24 = arith.constant 32 : index
    %64 = vector.load %arg12[%63, %c32_24] : memref<8x64xf32, #tpu.memory_space<vmem>>, vector<1x32xf32>
    tpu.vector_store %arg12[%63, %c32_24], %61 {strides = array<i32>} : memref<8x64xf32, #tpu.memory_space<vmem>>, vector<1x32xf32>,
    %c2_i32 = arith.constant 2 : i32
    %65 = arith.index_cast %c2_i32 : i32 to index
    %c0_25 = arith.constant 0 : index
    %66 = vector.load %arg11[%65, %c0_25] : memref<8x256xf32, #tpu.memory_space<vmem>>, vector<1x256xf32>
    %c0_26 = arith.constant 0 : index
    %c0_27 = arith.constant 0 : index
    %67 = vector.load %arg5[%c0_26, %c0_27] : memref<64x256xf32, #tpu.memory_space<vmem>>, vector<64x256xf32>
    %cst_28 = arith.constant dense<0.000000e+00> : vector<1x256xf32>
    %68 = tpu.matmul %57, %67, %cst_28 {dimension_numbers = #tpu.dot_dimension_numbers<[1], [0], [0], [1], [0, 0, 1, 1], [], []>} : vector<1x64xf32>, vector<64x256xf32>, vector<1x256xf32> -> vector<1x256xf32>
    %69 = arith.addf %66, %68 : vector<1x256xf32>
    %70 = vector.extract_strided_slice %69 {offsets = [0, 0], sizes = [1, 192], strides = [1, 1]} : vector<1x256xf32> to vector<1x192xf32>
    %71 = arith.negf %70 : vector<1x192xf32>
    %72 = math.exp %71 : vector<1x192xf32>
    %cst_29 = arith.constant 1.000000e+00 : f32
    %73 = vector.broadcast %cst_29 : f32 to vector<1x192xf32>
    %74 = arith.addf %73, %72 : vector<1x192xf32>
    %75 = arith.divf %73, %74 : vector<1x192xf32>
    %76 = vector.extract_strided_slice %75 {offsets = [0, 0], sizes = [1, 64], strides = [1, 1]} : vector<1x192xf32> to vector<1x64xf32>
    %77 = vector.extract_strided_slice %75 {offsets = [0, 64], sizes = [1, 64], strides = [1, 1]} : vector<1x192xf32> to vector<1x64xf32>
    %78 = vector.extract_strided_slice %75 {offsets = [0, 128], sizes = [1, 64], strides = [1, 1]} : vector<1x192xf32> to vector<1x64xf32>
    %79 = vector.extract_strided_slice %69 {offsets = [0, 192], sizes = [1, 64], strides = [1, 1]} : vector<1x256xf32> to vector<1x64xf32>
    %80 = math.tanh %79 : vector<1x64xf32>
    %81 = arith.mulf %77, %55 : vector<1x64xf32>
    %82 = arith.mulf %76, %80 : vector<1x64xf32>
    %83 = arith.addf %81, %82 : vector<1x64xf32>
    %84 = math.tanh %83 : vector<1x64xf32>
    %85 = arith.mulf %78, %84 : vector<1x64xf32>
    %86 = vector.extract_strided_slice %85 {offsets = [0, 0], sizes = [1, 32], strides = [1, 1]} : vector<1x64xf32> to vector<1x32xf32>
    %87 = arith.index_cast %c2_i32 : i32 to index
    %c0_30 = arith.constant 0 : index
    %88 = vector.load %arg12[%87, %c0_30] : memref<8x64xf32, #tpu.memory_space<vmem>>, vector<1x32xf32>
    tpu.vector_store %arg12[%87, %c0_30], %86 {strides = array<i32>} : memref<8x64xf32, #tpu.memory_space<vmem>>, vector<1x32xf32>,
    %89 = vector.extract_strided_slice %85 {offsets = [0, 32], sizes = [1, 32], strides = [1, 1]} : vector<1x64xf32> to vector<1x32xf32>
    %c7_i32_31 = arith.constant 7 : i32
    %90 = arith.subi %c7_i32_31, %c2_i32 : i32
    %91 = arith.index_cast %90 : i32 to index
    %c32_32 = arith.constant 32 : index
    %92 = vector.load %arg12[%91, %c32_32] : memref<8x64xf32, #tpu.memory_space<vmem>>, vector<1x32xf32>
    tpu.vector_store %arg12[%91, %c32_32], %89 {strides = array<i32>} : memref<8x64xf32, #tpu.memory_space<vmem>>, vector<1x32xf32>,
    %c3_i32 = arith.constant 3 : i32
    %93 = arith.index_cast %c3_i32 : i32 to index
    %c0_33 = arith.constant 0 : index
    %94 = vector.load %arg11[%93, %c0_33] : memref<8x256xf32, #tpu.memory_space<vmem>>, vector<1x256xf32>
    %c0_34 = arith.constant 0 : index
    %c0_35 = arith.constant 0 : index
    %95 = vector.load %arg5[%c0_34, %c0_35] : memref<64x256xf32, #tpu.memory_space<vmem>>, vector<64x256xf32>
    %cst_36 = arith.constant dense<0.000000e+00> : vector<1x256xf32>
    %96 = tpu.matmul %85, %95, %cst_36 {dimension_numbers = #tpu.dot_dimension_numbers<[1], [0], [0], [1], [0, 0, 1, 1], [], []>} : vector<1x64xf32>, vector<64x256xf32>, vector<1x256xf32> -> vector<1x256xf32>
    %97 = arith.addf %94, %96 : vector<1x256xf32>
    %98 = vector.extract_strided_slice %97 {offsets = [0, 0], sizes = [1, 192], strides = [1, 1]} : vector<1x256xf32> to vector<1x192xf32>
    %99 = arith.negf %98 : vector<1x192xf32>
    %100 = math.exp %99 : vector<1x192xf32>
    %cst_37 = arith.constant 1.000000e+00 : f32
    %101 = vector.broadcast %cst_37 : f32 to vector<1x192xf32>
    %102 = arith.addf %101, %100 : vector<1x192xf32>
    %103 = arith.divf %101, %102 : vector<1x192xf32>
    %104 = vector.extract_strided_slice %103 {offsets = [0, 0], sizes = [1, 64], strides = [1, 1]} : vector<1x192xf32> to vector<1x64xf32>
    %105 = vector.extract_strided_slice %103 {offsets = [0, 64], sizes = [1, 64], strides = [1, 1]} : vector<1x192xf32> to vector<1x64xf32>
    %106 = vector.extract_strided_slice %103 {offsets = [0, 128], sizes = [1, 64], strides = [1, 1]} : vector<1x192xf32> to vector<1x64xf32>
    %107 = vector.extract_strided_slice %97 {offsets = [0, 192], sizes = [1, 64], strides = [1, 1]} : vector<1x256xf32> to vector<1x64xf32>
    %108 = math.tanh %107 : vector<1x64xf32>
    %109 = arith.mulf %105, %83 : vector<1x64xf32>
    %110 = arith.mulf %104, %108 : vector<1x64xf32>
    %111 = arith.addf %109, %110 : vector<1x64xf32>
    %112 = math.tanh %111 : vector<1x64xf32>
    %113 = arith.mulf %106, %112 : vector<1x64xf32>
    %114 = vector.extract_strided_slice %113 {offsets = [0, 0], sizes = [1, 32], strides = [1, 1]} : vector<1x64xf32> to vector<1x32xf32>
    %115 = arith.index_cast %c3_i32 : i32 to index
    %c0_38 = arith.constant 0 : index
    %116 = vector.load %arg12[%115, %c0_38] : memref<8x64xf32, #tpu.memory_space<vmem>>, vector<1x32xf32>
    tpu.vector_store %arg12[%115, %c0_38], %114 {strides = array<i32>} : memref<8x64xf32, #tpu.memory_space<vmem>>, vector<1x32xf32>,
    %117 = vector.extract_strided_slice %113 {offsets = [0, 32], sizes = [1, 32], strides = [1, 1]} : vector<1x64xf32> to vector<1x32xf32>
    %c7_i32_39 = arith.constant 7 : i32
    %118 = arith.subi %c7_i32_39, %c3_i32 : i32
    %119 = arith.index_cast %118 : i32 to index
    %c32_40 = arith.constant 32 : index
    %120 = vector.load %arg12[%119, %c32_40] : memref<8x64xf32, #tpu.memory_space<vmem>>, vector<1x32xf32>
    tpu.vector_store %arg12[%119, %c32_40], %117 {strides = array<i32>} : memref<8x64xf32, #tpu.memory_space<vmem>>, vector<1x32xf32>,
    %c4_i32 = arith.constant 4 : i32
    %121 = arith.index_cast %c4_i32 : i32 to index
    %c0_41 = arith.constant 0 : index
    %122 = vector.load %arg11[%121, %c0_41] : memref<8x256xf32, #tpu.memory_space<vmem>>, vector<1x256xf32>
    %c0_42 = arith.constant 0 : index
    %c0_43 = arith.constant 0 : index
    %123 = vector.load %arg5[%c0_42, %c0_43] : memref<64x256xf32, #tpu.memory_space<vmem>>, vector<64x256xf32>
    %cst_44 = arith.constant dense<0.000000e+00> : vector<1x256xf32>
    %124 = tpu.matmul %113, %123, %cst_44 {dimension_numbers = #tpu.dot_dimension_numbers<[1], [0], [0], [1], [0, 0, 1, 1], [], []>} : vector<1x64xf32>, vector<64x256xf32>, vector<1x256xf32> -> vector<1x256xf32>
    %125 = arith.addf %122, %124 : vector<1x256xf32>
    %126 = vector.extract_strided_slice %125 {offsets = [0, 0], sizes = [1, 192], strides = [1, 1]} : vector<1x256xf32> to vector<1x192xf32>
    %127 = arith.negf %126 : vector<1x192xf32>
    %128 = math.exp %127 : vector<1x192xf32>
    %cst_45 = arith.constant 1.000000e+00 : f32
    %129 = vector.broadcast %cst_45 : f32 to vector<1x192xf32>
    %130 = arith.addf %129, %128 : vector<1x192xf32>
    %131 = arith.divf %129, %130 : vector<1x192xf32>
    %132 = vector.extract_strided_slice %131 {offsets = [0, 0], sizes = [1, 64], strides = [1, 1]} : vector<1x192xf32> to vector<1x64xf32>
    %133 = vector.extract_strided_slice %131 {offsets = [0, 64], sizes = [1, 64], strides = [1, 1]} : vector<1x192xf32> to vector<1x64xf32>
    %134 = vector.extract_strided_slice %131 {offsets = [0, 128], sizes = [1, 64], strides = [1, 1]} : vector<1x192xf32> to vector<1x64xf32>
    %135 = vector.extract_strided_slice %125 {offsets = [0, 192], sizes = [1, 64], strides = [1, 1]} : vector<1x256xf32> to vector<1x64xf32>
    %136 = math.tanh %135 : vector<1x64xf32>
    %137 = arith.mulf %133, %111 : vector<1x64xf32>
    %138 = arith.mulf %132, %136 : vector<1x64xf32>
    %139 = arith.addf %137, %138 : vector<1x64xf32>
    %140 = math.tanh %139 : vector<1x64xf32>
    %141 = arith.mulf %134, %140 : vector<1x64xf32>
    %142 = vector.extract_strided_slice %141 {offsets = [0, 0], sizes = [1, 32], strides = [1, 1]} : vector<1x64xf32> to vector<1x32xf32>
    %143 = arith.index_cast %c4_i32 : i32 to index
    %c0_46 = arith.constant 0 : index
    %144 = vector.load %arg12[%143, %c0_46] : memref<8x64xf32, #tpu.memory_space<vmem>>, vector<1x32xf32>
    tpu.vector_store %arg12[%143, %c0_46], %142 {strides = array<i32>} : memref<8x64xf32, #tpu.memory_space<vmem>>, vector<1x32xf32>,
    %145 = vector.extract_strided_slice %141 {offsets = [0, 32], sizes = [1, 32], strides = [1, 1]} : vector<1x64xf32> to vector<1x32xf32>
    %c7_i32_47 = arith.constant 7 : i32
    %146 = arith.subi %c7_i32_47, %c4_i32 : i32
    %147 = arith.index_cast %146 : i32 to index
    %c32_48 = arith.constant 32 : index
    %148 = vector.load %arg12[%147, %c32_48] : memref<8x64xf32, #tpu.memory_space<vmem>>, vector<1x32xf32>
    tpu.vector_store %arg12[%147, %c32_48], %145 {strides = array<i32>} : memref<8x64xf32, #tpu.memory_space<vmem>>, vector<1x32xf32>,
    %c5_i32 = arith.constant 5 : i32
    %149 = arith.index_cast %c5_i32 : i32 to index
    %c0_49 = arith.constant 0 : index
    %150 = vector.load %arg11[%149, %c0_49] : memref<8x256xf32, #tpu.memory_space<vmem>>, vector<1x256xf32>
    %c0_50 = arith.constant 0 : index
    %c0_51 = arith.constant 0 : index
    %151 = vector.load %arg5[%c0_50, %c0_51] : memref<64x256xf32, #tpu.memory_space<vmem>>, vector<64x256xf32>
    %cst_52 = arith.constant dense<0.000000e+00> : vector<1x256xf32>
    %152 = tpu.matmul %141, %151, %cst_52 {dimension_numbers = #tpu.dot_dimension_numbers<[1], [0], [0], [1], [0, 0, 1, 1], [], []>} : vector<1x64xf32>, vector<64x256xf32>, vector<1x256xf32> -> vector<1x256xf32>
    %153 = arith.addf %150, %152 : vector<1x256xf32>
    %154 = vector.extract_strided_slice %153 {offsets = [0, 0], sizes = [1, 192], strides = [1, 1]} : vector<1x256xf32> to vector<1x192xf32>
    %155 = arith.negf %154 : vector<1x192xf32>
    %156 = math.exp %155 : vector<1x192xf32>
    %cst_53 = arith.constant 1.000000e+00 : f32
    %157 = vector.broadcast %cst_53 : f32 to vector<1x192xf32>
    %158 = arith.addf %157, %156 : vector<1x192xf32>
    %159 = arith.divf %157, %158 : vector<1x192xf32>
    %160 = vector.extract_strided_slice %159 {offsets = [0, 0], sizes = [1, 64], strides = [1, 1]} : vector<1x192xf32> to vector<1x64xf32>
    %161 = vector.extract_strided_slice %159 {offsets = [0, 64], sizes = [1, 64], strides = [1, 1]} : vector<1x192xf32> to vector<1x64xf32>
    %162 = vector.extract_strided_slice %159 {offsets = [0, 128], sizes = [1, 64], strides = [1, 1]} : vector<1x192xf32> to vector<1x64xf32>
    %163 = vector.extract_strided_slice %153 {offsets = [0, 192], sizes = [1, 64], strides = [1, 1]} : vector<1x256xf32> to vector<1x64xf32>
    %164 = math.tanh %163 : vector<1x64xf32>
    %165 = arith.mulf %161, %139 : vector<1x64xf32>
    %166 = arith.mulf %160, %164 : vector<1x64xf32>
    %167 = arith.addf %165, %166 : vector<1x64xf32>
    %168 = math.tanh %167 : vector<1x64xf32>
    %169 = arith.mulf %162, %168 : vector<1x64xf32>
    %170 = vector.extract_strided_slice %169 {offsets = [0, 0], sizes = [1, 32], strides = [1, 1]} : vector<1x64xf32> to vector<1x32xf32>
    %171 = arith.index_cast %c5_i32 : i32 to index
    %c0_54 = arith.constant 0 : index
    %172 = vector.load %arg12[%171, %c0_54] : memref<8x64xf32, #tpu.memory_space<vmem>>, vector<1x32xf32>
    tpu.vector_store %arg12[%171, %c0_54], %170 {strides = array<i32>} : memref<8x64xf32, #tpu.memory_space<vmem>>, vector<1x32xf32>,
    %173 = vector.extract_strided_slice %169 {offsets = [0, 32], sizes = [1, 32], strides = [1, 1]} : vector<1x64xf32> to vector<1x32xf32>
    %c7_i32_55 = arith.constant 7 : i32
    %174 = arith.subi %c7_i32_55, %c5_i32 : i32
    %175 = arith.index_cast %174 : i32 to index
    %c32_56 = arith.constant 32 : index
    %176 = vector.load %arg12[%175, %c32_56] : memref<8x64xf32, #tpu.memory_space<vmem>>, vector<1x32xf32>
    tpu.vector_store %arg12[%175, %c32_56], %173 {strides = array<i32>} : memref<8x64xf32, #tpu.memory_space<vmem>>, vector<1x32xf32>,
    %c6_i32 = arith.constant 6 : i32
    %177 = arith.index_cast %c6_i32 : i32 to index
    %c0_57 = arith.constant 0 : index
    %178 = vector.load %arg11[%177, %c0_57] : memref<8x256xf32, #tpu.memory_space<vmem>>, vector<1x256xf32>
    %c0_58 = arith.constant 0 : index
    %c0_59 = arith.constant 0 : index
    %179 = vector.load %arg5[%c0_58, %c0_59] : memref<64x256xf32, #tpu.memory_space<vmem>>, vector<64x256xf32>
    %cst_60 = arith.constant dense<0.000000e+00> : vector<1x256xf32>
    %180 = tpu.matmul %169, %179, %cst_60 {dimension_numbers = #tpu.dot_dimension_numbers<[1], [0], [0], [1], [0, 0, 1, 1], [], []>} : vector<1x64xf32>, vector<64x256xf32>, vector<1x256xf32> -> vector<1x256xf32>
    %181 = arith.addf %178, %180 : vector<1x256xf32>
    %182 = vector.extract_strided_slice %181 {offsets = [0, 0], sizes = [1, 192], strides = [1, 1]} : vector<1x256xf32> to vector<1x192xf32>
    %183 = arith.negf %182 : vector<1x192xf32>
    %184 = math.exp %183 : vector<1x192xf32>
    %cst_61 = arith.constant 1.000000e+00 : f32
    %185 = vector.broadcast %cst_61 : f32 to vector<1x192xf32>
    %186 = arith.addf %185, %184 : vector<1x192xf32>
    %187 = arith.divf %185, %186 : vector<1x192xf32>
    %188 = vector.extract_strided_slice %187 {offsets = [0, 0], sizes = [1, 64], strides = [1, 1]} : vector<1x192xf32> to vector<1x64xf32>
    %189 = vector.extract_strided_slice %187 {offsets = [0, 64], sizes = [1, 64], strides = [1, 1]} : vector<1x192xf32> to vector<1x64xf32>
    %190 = vector.extract_strided_slice %187 {offsets = [0, 128], sizes = [1, 64], strides = [1, 1]} : vector<1x192xf32> to vector<1x64xf32>
    %191 = vector.extract_strided_slice %181 {offsets = [0, 192], sizes = [1, 64], strides = [1, 1]} : vector<1x256xf32> to vector<1x64xf32>
    %192 = math.tanh %191 : vector<1x64xf32>
    %193 = arith.mulf %189, %167 : vector<1x64xf32>
    %194 = arith.mulf %188, %192 : vector<1x64xf32>
    %195 = arith.addf %193, %194 : vector<1x64xf32>
    %196 = math.tanh %195 : vector<1x64xf32>
    %197 = arith.mulf %190, %196 : vector<1x64xf32>
    %198 = vector.extract_strided_slice %197 {offsets = [0, 0], sizes = [1, 32], strides = [1, 1]} : vector<1x64xf32> to vector<1x32xf32>
    %199 = arith.index_cast %c6_i32 : i32 to index
    %c0_62 = arith.constant 0 : index
    %200 = vector.load %arg12[%199, %c0_62] : memref<8x64xf32, #tpu.memory_space<vmem>>, vector<1x32xf32>
    tpu.vector_store %arg12[%199, %c0_62], %198 {strides = array<i32>} : memref<8x64xf32, #tpu.memory_space<vmem>>, vector<1x32xf32>,
    %201 = vector.extract_strided_slice %197 {offsets = [0, 32], sizes = [1, 32], strides = [1, 1]} : vector<1x64xf32> to vector<1x32xf32>
    %c7_i32_63 = arith.constant 7 : i32
    %202 = arith.subi %c7_i32_63, %c6_i32 : i32
    %203 = arith.index_cast %202 : i32 to index
    %c32_64 = arith.constant 32 : index
    %204 = vector.load %arg12[%203, %c32_64] : memref<8x64xf32, #tpu.memory_space<vmem>>, vector<1x32xf32>
    tpu.vector_store %arg12[%203, %c32_64], %201 {strides = array<i32>} : memref<8x64xf32, #tpu.memory_space<vmem>>, vector<1x32xf32>,
    %c7_i32_65 = arith.constant 7 : i32
    %205 = arith.index_cast %c7_i32_65 : i32 to index
    %c0_66 = arith.constant 0 : index
    %206 = vector.load %arg11[%205, %c0_66] : memref<8x256xf32, #tpu.memory_space<vmem>>, vector<1x256xf32>
    %c0_67 = arith.constant 0 : index
    %c0_68 = arith.constant 0 : index
    %207 = vector.load %arg5[%c0_67, %c0_68] : memref<64x256xf32, #tpu.memory_space<vmem>>, vector<64x256xf32>
    %cst_69 = arith.constant dense<0.000000e+00> : vector<1x256xf32>
    %208 = tpu.matmul %197, %207, %cst_69 {dimension_numbers = #tpu.dot_dimension_numbers<[1], [0], [0], [1], [0, 0, 1, 1], [], []>} : vector<1x64xf32>, vector<64x256xf32>, vector<1x256xf32> -> vector<1x256xf32>
    %209 = arith.addf %206, %208 : vector<1x256xf32>
    %210 = vector.extract_strided_slice %209 {offsets = [0, 0], sizes = [1, 192], strides = [1, 1]} : vector<1x256xf32> to vector<1x192xf32>
    %211 = arith.negf %210 : vector<1x192xf32>
    %212 = math.exp %211 : vector<1x192xf32>
    %cst_70 = arith.constant 1.000000e+00 : f32
    %213 = vector.broadcast %cst_70 : f32 to vector<1x192xf32>
    %214 = arith.addf %213, %212 : vector<1x192xf32>
    %215 = arith.divf %213, %214 : vector<1x192xf32>
    %216 = vector.extract_strided_slice %215 {offsets = [0, 0], sizes = [1, 64], strides = [1, 1]} : vector<1x192xf32> to vector<1x64xf32>
    %217 = vector.extract_strided_slice %215 {offsets = [0, 64], sizes = [1, 64], strides = [1, 1]} : vector<1x192xf32> to vector<1x64xf32>
    %218 = vector.extract_strided_slice %215 {offsets = [0, 128], sizes = [1, 64], strides = [1, 1]} : vector<1x192xf32> to vector<1x64xf32>
    %219 = vector.extract_strided_slice %209 {offsets = [0, 192], sizes = [1, 64], strides = [1, 1]} : vector<1x256xf32> to vector<1x64xf32>
    %220 = math.tanh %219 : vector<1x64xf32>
    %221 = arith.mulf %217, %195 : vector<1x64xf32>
    %222 = arith.mulf %216, %220 : vector<1x64xf32>
    %223 = arith.addf %221, %222 : vector<1x64xf32>
    %224 = math.tanh %223 : vector<1x64xf32>
    %225 = arith.mulf %218, %224 : vector<1x64xf32>
    %226 = vector.extract_strided_slice %225 {offsets = [0, 0], sizes = [1, 32], strides = [1, 1]} : vector<1x64xf32> to vector<1x32xf32>
    %227 = arith.index_cast %c7_i32_65 : i32 to index
    %c0_71 = arith.constant 0 : index
    %228 = vector.load %arg12[%227, %c0_71] : memref<8x64xf32, #tpu.memory_space<vmem>>, vector<1x32xf32>
    tpu.vector_store %arg12[%227, %c0_71], %226 {strides = array<i32>} : memref<8x64xf32, #tpu.memory_space<vmem>>, vector<1x32xf32>,
    %229 = vector.extract_strided_slice %225 {offsets = [0, 32], sizes = [1, 32], strides = [1, 1]} : vector<1x64xf32> to vector<1x32xf32>
    %c7_i32_72 = arith.constant 7 : i32
    %230 = arith.subi %c7_i32_72, %c7_i32_65 : i32
    %231 = arith.index_cast %230 : i32 to index
    %c32_73 = arith.constant 32 : index
    %232 = vector.load %arg12[%231, %c32_73] : memref<8x64xf32, #tpu.memory_space<vmem>>, vector<1x32xf32>
    tpu.vector_store %arg12[%231, %c32_73], %229 {strides = array<i32>} : memref<8x64xf32, #tpu.memory_space<vmem>>, vector<1x32xf32>,
    %c8_i32 = arith.constant 8 : i32
    %c0_74 = arith.constant 0 : index
    %c0_75 = arith.constant 0 : index
    %233 = vector.load %arg12[%c0_74, %c0_75] : memref<8x64xf32, #tpu.memory_space<vmem>>, vector<8x64xf32>
    %c0_76 = arith.constant 0 : index
    %c0_77 = arith.constant 0 : index
    %234 = vector.load %arg6[%c0_76, %c0_77] : memref<64x16xf32, #tpu.memory_space<vmem>>, vector<64x16xf32>
    %cst_78 = arith.constant dense<0.000000e+00> : vector<8x16xf32>
    %235 = tpu.matmul %233, %234, %cst_78 {dimension_numbers = #tpu.dot_dimension_numbers<[1], [0], [0], [1], [0, 0, 1, 1], [], []>} : vector<8x64xf32>, vector<64x16xf32>, vector<8x16xf32> -> vector<8x16xf32>
    %c0_79 = arith.constant 0 : index
    %c0_80 = arith.constant 0 : index
    %236 = vector.load %arg7[%c0_79, %c0_80] : memref<1x16xf32, #tpu.memory_space<vmem>>, vector<1x16xf32>
    %237 = vector.broadcast %236 : vector<1x16xf32> to vector<8x16xf32>
    %238 = arith.addf %235, %237 : vector<8x16xf32>
    %239 = math.tanh %238 : vector<8x16xf32>
    %c0_81 = arith.constant 0 : index
    %c0_82 = arith.constant 0 : index
    %240 = vector.load %arg8[%c0_81, %c0_82] : memref<1x16xf32, #tpu.memory_space<vmem>>, vector<1x16xf32>
    %241 = vector.broadcast %240 : vector<1x16xf32> to vector<8x16xf32>
    %242 = arith.mulf %239, %241 : vector<8x16xf32>
    %cst_83 = arith.constant dense<0.000000e+00> : vector<8xf32>
    %243 = vector.multi_reduction <add>, %242, %cst_83 [1] : vector<8x16xf32> to vector<8xf32>
    %244 = vector.shape_cast %243 : vector<8xf32> to vector<8x1xf32>
    %c0_84 = arith.constant 0 : index
    %c0_85 = arith.constant 0 : index
    %245 = vector.load %arg9[%c0_84, %c0_85] : memref<1x1xf32, #tpu.memory_space<vmem>>, vector<1x1xf32>
    %246 = vector.broadcast %245 : vector<1x1xf32> to vector<8x1xf32>
    %247 = arith.addf %244, %246 : vector<8x1xf32>
    %cst_86 = arith.constant dense<0xFF800000> : vector<1xf32>
    %248 = vector.multi_reduction <maximumf>, %247, %cst_86 [0] : vector<8x1xf32> to vector<1xf32>
    %249 = vector.shape_cast %248 : vector<1xf32> to vector<1x1xf32>
    %250 = vector.broadcast %249 : vector<1x1xf32> to vector<8x1xf32>
    %251 = arith.subf %247, %250 : vector<8x1xf32>
    %252 = math.exp %251 : vector<8x1xf32>
    %cst_87 = arith.constant dense<0.000000e+00> : vector<1xf32>
    %253 = vector.multi_reduction <add>, %252, %cst_87 [0] : vector<8x1xf32> to vector<1xf32>
    %254 = vector.shape_cast %253 : vector<1xf32> to vector<1x1xf32>
    %255 = vector.broadcast %254 : vector<1x1xf32> to vector<8x1xf32>
    %256 = arith.divf %252, %255 : vector<8x1xf32>
    %c0_88 = arith.constant 0 : index
    %c0_89 = arith.constant 0 : index
    %257 = vector.load %arg10[%c0_88, %c0_89] : memref<8x1xf32, #tpu.memory_space<vmem>>, vector<8x1xf32>
    tpu.vector_store %arg10[%c0_88, %c0_89], %256 {strides = array<i32>} : memref<8x1xf32, #tpu.memory_space<vmem>>, vector<8x1xf32>,
    return
  }
}

</mosaic_0001>

<llo_original>
// kernel: tpu_custom_call.1
$region0: #{tpu_custom_call.1}
  #allocation0 [shape = 'u32[]', space=smem, size = 0x4, offset = 0x4, fixed_abs, tag = 'smem constant byte address 0x4 - core index']
  #allocation1 [shape = 'u32[144,128]{1,0:T(1,128)}', space=vmem, size = 0x12000, scoped, tag = 'internal scratch']
  #allocation2 [shape = 'f32[8,256]{1,0:T(8,128)}', space=vmem, size = 0x2000, scoped, tag = 'scratch operand']
  #allocation3 [shape = 'f32[8,64]{1,0:T(8,128)}', space=vmem, size = 0x1000, scoped, tag = 'scratch operand']
  #allocation4 [shape = 'f32[1,1]{1,0:T(1,128)S(1)}', space=vmem, size = 0x200, scoped, tag = 'scoped memory for tpu_custom_call.1']
  %s0 = inlined_call_operand.vmem [shape: f32[8,32], index: 0, kind: input, shape index: {}]
  %s1 = inlined_call_operand.vmem [shape: f32[1,64], index: 1, kind: input, shape index: {}]
  %s2 = inlined_call_operand.vmem [shape: f32[1,64], index: 2, kind: input, shape index: {}]
  %s3 = inlined_call_operand.vmem [shape: f32[32,256], index: 3, kind: input, shape index: {}]
  %s4 = inlined_call_operand.vmem [shape: f32[1,256], index: 4, kind: input, shape index: {}]
  %s5 = inlined_call_operand.hbm [shape: f32[64,256], index: 5, kind: input, shape index: {}]
  %s6 = inlined_call_operand.vmem [shape: f32[64,16], index: 6, kind: input, shape index: {}]
  %s7 = inlined_call_operand.vmem [shape: f32[1,16], index: 7, kind: input, shape index: {}]
  %s8 = inlined_call_operand.vmem [shape: f32[1,16], index: 8, kind: input, shape index: {}]
  %s9 = inlined_call_operand.<no memory space> [shape: f32[1,1], index: 9, kind: input, shape index: {}]
  %s10 = inlined_call_operand.vmem [shape: f32[8,1], index: 10, kind: output, shape index: {}]
  %s11 = sld [smem:[#allocation0]]
  $region54: #{tpu_custom_call.1} parent=0
    _
  %s13 = ssub.s32 1, %s11
  %s14 = scalar_select 0, %s13, %s11
  %v15 = vstv %s9
  %16 = vst [vmem:[#allocation4] sm:$0x1] %v15
  $region1: #{tpu_custom_call.1} parent=0
    #allocation5 [shape = 'u8[65536]{0}', space=vmem, size = 0x10000, scoped, tag = 'input window, operand 5, single buffered']
    #allocation6 [shape = 's32[1]{0}', space=sflag, size = 0x4, scoped, tag = 'scoped memory for tpu_custom_call.1']
    %17 = vsyncpa [#allocation6], 0
    // Predicated region
    $region2: #{tpu_custom_call.1} parent=1 // pred_check
      _
    $region3: #{tpu_custom_call.1} parent=1 // pred_check_branch
      %19 = sbr.rel (0) target = $region5
    $region4: #{tpu_custom_call.1} parent=1 // pred_region
      _
    $region5: #{tpu_custom_call.1} parent=1 // pred_fallthru
      _
    // Predicated region
    $region6: #{tpu_custom_call.1} parent=1 // pred_check
      _
    $region7: #{tpu_custom_call.1} parent=1 // pred_check_branch
      %21 = sbr.rel (0) target = $region9
    $region8: #{tpu_custom_call.1} parent=1 // pred_region
      _
    $region9: #{tpu_custom_call.1} parent=1 // pred_fallthru
      _
    // Predicated region
    $region10: #{tpu_custom_call.1} parent=1 // pred_check
      _
    $region11: #{tpu_custom_call.1} parent=1 // pred_check_branch
      %23 = sbr.rel (0) target = $region13
    $region12: #{tpu_custom_call.1} parent=1 // pred_region
      _
    $region13: #{tpu_custom_call.1} parent=1 // pred_fallthru
      _
    // Predicated region
    $region14: #{tpu_custom_call.1} parent=1 // pred_check
      _
    $region15: #{tpu_custom_call.1} parent=1 // pred_check_branch
      %25 = sbr.rel (0) target = $region17
    $region16: #{tpu_custom_call.1} parent=1 // pred_region
      _
    $region17: #{tpu_custom_call.1} parent=1 // pred_fallthru
      _
    // Predicated region
    $region18: #{tpu_custom_call.1} parent=1 // pred_check
      _
    $region19: #{tpu_custom_call.1} parent=1 // pred_check_branch
      %27 = sbr.rel (0) target = $region21
    $region20: #{tpu_custom_call.1} parent=1 // pred_region
      _
    $region21: #{tpu_custom_call.1} parent=1 // pred_fallthru
      _
    // Predicated region
    $region22: #{tpu_custom_call.1} parent=1 // pred_check
      _
    $region23: #{tpu_custom_call.1} parent=1 // pred_check_branch
      %29 = sbr.rel (0) target = $region25
    $region24: #{tpu_custom_call.1} parent=1 // pred_region
      %s31 = ssub.s32 2048, 2048
      %32 = vsyncadd [#allocation6], %s31
      %s33 = sshll.u32 [#allocation5], 4
      %s34 = int_to_ptr.vmem [resolvable:$true] %s33
      %39 = dma.hbm_to_vmem [thread:$0]  %s5, 2048, %s34, [#allocation6], 256, 256, 16
    $region25: #{tpu_custom_call.1} parent=1 // pred_fallthru
      _
    // Predicated region
    $region26: #{tpu_custom_call.1} parent=1 // pred_check
      _
    $region27: #{tpu_custom_call.1} parent=1 // pred_check_branch
      %41 = sbr.rel (0) target = $region29
    $region28: #{tpu_custom_call.1} parent=1 // pred_region
      _
    $region29: #{tpu_custom_call.1} parent=1 // pred_fallthru
      _
    // Predicated region
    $region30: #{tpu_custom_call.1} parent=1 // pred_check
      _
    $region31: #{tpu_custom_call.1} parent=1 // pred_check_branch
      %43 = sbr.rel (0) target = $region33
    $region32: #{tpu_custom_call.1} parent=1 // pred_region
      _
    $region33: #{tpu_custom_call.1} parent=1 // pred_fallthru
      _
    // Predicated region
    $region34: #{tpu_custom_call.1} parent=1 // pred_check
      _
    $region35: #{tpu_custom_call.1} parent=1 // pred_check_branch
      %45 = sbr.rel (0) target = $region37
    $region36: #{tpu_custom_call.1} parent=1 // pred_region
      _
    $region37: #{tpu_custom_call.1} parent=1 // pred_fallthru
      _
    // Predicated region
    $region38: #{tpu_custom_call.1} parent=1 // pred_check
      _
    $region39: #{tpu_custom_call.1} parent=1 // pred_check_branch
      %47 = sbr.rel (0) target = $region41
    $region40: #{tpu_custom_call.1} parent=1 // pred_region
      _
    $region41: #{tpu_custom_call.1} parent=1 // pred_fallthru
      _
    // Predicated region
    $region42: #{tpu_custom_call.1} parent=1 // pred_check
      _
    $region43: #{tpu_custom_call.1} parent=1 // pred_check_branch
      %49 = sbr.rel (0) target = $region45
    $region44: #{tpu_custom_call.1} parent=1 // pred_region
      %50 = dma.done [#allocation6], 2048
    $region45: #{tpu_custom_call.1} parent=1 // pred_fallthru
      _
    %v51 = vld [vmem:[%s0] sm:$0xff]
    %v52 = vld [vmem:[%s3] sm:$0xff]
    %v53 = vld [vmem:[%s3 + $0x8] sm:$0xff]
    %v54 = vld [vmem:[%s3 + $0x10] sm:$0xff]
    %v55 = vld [vmem:[%s3 + $0x18] sm:$0xff]
    %v56 = vld [vmem:[%s3 + $0x20] sm:$0xff]
    %v57 = vld [vmem:[%s3 + $0x28] sm:$0xff]
    %v58 = vld [vmem:[%s3 + $0x30] sm:$0xff]
    %v59 = vld [vmem:[%s3 + $0x38] sm:$0xff]
    %v60 = vld [vmem:[%s4] sm:$0x3]
    %v62 = vlaneseq
    %v63 = vshrl.u32 %v62, 7
    %v64 = vsub.s32 0, %v63
    %v65 = vrot.slane %v60, %v64
    %v66 = vlaneseq
    %v67 = vshrl.u32 %v66, 7
    %v68 = vsub.s32 1, %v67
    %v69 = vrot.slane %v60, %v68
    %vm72 = vcmask 261120
    %v74 = vsel %vm72, %v51, 0
    %76 = vmatprep.subr.mxu0 0.0
    %77 = vmatpush1.msra.mxu0 0.0
    %78 = vmatprep.subr.mxu0 0.0
    %79 = vmatpush1.msra.mxu0 0.0
    %80 = vmatprep.subr.mxu0 0.0
    %81 = vmatpush1.msra.mxu0 0.0
    %82 = vmatprep.subr.mxu0 0.0
    %83 = vmatpush1.msra.mxu0 0.0
    %84 = vmatprep.subr.mxu0 0.0
    %85 = vmatpush1.msra.mxu0 0.0
    %86 = vmatprep.subr.mxu0 0.0
    %87 = vmatpush1.msra.mxu0 0.0
    %88 = vmatprep.subr.mxu0 0.0
    %89 = vmatpush1.msra.mxu0 0.0
    %90 = vmatprep.subr.mxu0 0.0
    %91 = vmatpush1.msra.mxu0 0.0
    %92 = vmatprep.subr.mxu0 0.0
    %93 = vmatpush1.msra.mxu0 0.0
    %94 = vmatprep.subr.mxu0 0.0
    %95 = vmatpush1.msra.mxu0 0.0
    %96 = vmatprep.subr.mxu0 0.0
    %97 = vmatpush1.msra.mxu0 0.0
    %98 = vmatprep.subr.mxu0 0.0
    %99 = vmatpush1.msra.mxu0 0.0
    %100 = vmatprep.subr.mxu0 %v59
    %101 = vmatpush1.msra.mxu0 %v58
    %102 = vmatprep.subr.mxu0 %v57
    %103 = vmatpush1.msra.mxu0 %v56
    %104 = vmatprep.subr.mxu0 %v55
    %105 = vmatpush1.msra.mxu0 %v54
    %106 = vmatprep.subr.mxu0 %v53
    %107 = vmatpush1.msra.mxu0 %v52
    %108 = vmatprep.subr.mxu0 0.0
    %109 = vmatpush2.msra.mxu0 0.0
    %110 = vmatprep.subr.mxu0 0.0
    %111 = vmatpush2.msra.mxu0 0.0
    %112 = vmatprep.subr.mxu0 0.0
    %113 = vmatpush2.msra.mxu0 0.0
    %114 = vmatprep.subr.mxu0 0.0
    %115 = vmatpush2.msra.mxu0 0.0
    %116 = vmatprep.subr.mxu0 0.0
    %117 = vmatpush2.msra.mxu0 0.0
    %118 = vmatprep.subr.mxu0 0.0
    %119 = vmatpush2.msra.mxu0 0.0
    %120 = vmatprep.subr.mxu0 0.0
    %121 = vmatpush2.msra.mxu0 0.0
    %122 = vmatprep.subr.mxu0 0.0
    %123 = vmatpush2.msra.mxu0 0.0
    %124 = vmatprep.subr.mxu0 0.0
    %125 = vmatpush2.msra.mxu0 0.0
    %126 = vmatprep.subr.mxu0 0.0
    %127 = vmatpush2.msra.mxu0 0.0
    %128 = vmatprep.subr.mxu0 0.0
    %129 = vmatpush2.msra.mxu0 0.0
    %130 = vmatprep.subr.mxu0 0.0
    %131 = vmatpush2.msra.mxu0 0.0
    %132 = vmatprep.subr.mxu0 0.0
    %133 = vmatpush2.msra.mxu0 0.0
    %134 = vmatprep.subr.mxu0 0.0
    %135 = vmatpush2.msra.mxu0 0.0
    %136 = vmatprep.subr.mxu0 0.0
    %137 = vmatpush2.msra.mxu0 0.0
    %138 = vmatprep.subr.mxu0 0.0
    %139 = vmatpush2.msra.mxu0 0.0
    %140 = vmatprep.mubr.f32.mxu0 0.0
    %141 = vmatmul.mubr.f32.gmra.mxu0 %v74
    %v142 = vpop.f32.mrf.mxu0
    %v143 = vadd.f32 %v65, %v142
    %v144 = vpop.f32.mrf.mxu0
    %v145 = vadd.f32 %v69, %v144
    %146 = vdwg.mxu0
    %147 = vst [vmem:[#allocation2] sm:$0xff] %v143
    %148 = vst [vmem:[#allocation2 + $0x8] sm:$0xff] %v145
    %v149 = vld [vmem:[%s1] sm:$0x1]
    %v150 = vld [vmem:[%s2] sm:$0x1]
    %v151 = vld [vmem:[#allocation2] ss:$8 sm:$0x3]
    %v152 = vld [vmem:[#allocation5] sm:$0xff]
    %v153 = vld [vmem:[#allocation5 + $0x8] sm:$0xff]
    %v154 = vld [vmem:[#allocation5 + $0x10] sm:$0xff]
    %v155 = vld [vmem:[#allocation5 + $0x18] sm:$0xff]
    %v156 = vld [vmem:[#allocation5 + $0x20] sm:$0xff]
    %v157 = vld [vmem:[#allocation5 + $0x28] sm:$0xff]
    %v158 = vld [vmem:[#allocation5 + $0x30] sm:$0xff]
    %v159 = vld [vmem:[#allocation5 + $0x38] sm:$0xff]
    %v160 = vld [vmem:[#allocation5 + $0x40] sm:$0xff]
    %v161 = vld [vmem:[#allocation5 + $0x48] sm:$0xff]
    %v162 = vld [vmem:[#allocation5 + $0x50] sm:$0xff]
    %v163 = vld [vmem:[#allocation5 + $0x58] sm:$0xff]
    %v164 = vld [vmem:[#allocation5 + $0x60] sm:$0xff]
    %v165 = vld [vmem:[#allocation5 + $0x68] sm:$0xff]
    %v166 = vld [vmem:[#allocation5 + $0x70] sm:$0xff]
    %v167 = vld [vmem:[#allocation5 + $0x78] sm:$0xff]
    %vm168 = vcmask 523264
    %v170 = vsel %vm168, %v149, 0
    %172 = vmatprep.subr.mxu0 0.0
    %173 = vmatpush1.msra.mxu0 0.0
    %174 = vmatprep.subr.mxu0 0.0
    %175 = vmatpush1.msra.mxu0 0.0
    %176 = vmatprep.subr.mxu0 0.0
    %177 = vmatpush1.msra.mxu0 0.0
    %178 = vmatprep.subr.mxu0 0.0
    %179 = vmatpush1.msra.mxu0 0.0
    %180 = vmatprep.subr.mxu0 0.0
    %181 = vmatpush1.msra.mxu0 0.0
    %182 = vmatprep.subr.mxu0 0.0
    %183 = vmatpush1.msra.mxu0 0.0
    %184 = vmatprep.subr.mxu0 0.0
    %185 = vmatpush1.msra.mxu0 0.0
    %186 = vmatprep.subr.mxu0 0.0
    %187 = vmatpush1.msra.mxu0 0.0
    %188 = vmatprep.subr.mxu0 %v167
    %189 = vmatpush1.msra.mxu0 %v166
    %190 = vmatprep.subr.mxu0 %v165
    %191 = vmatpush1.msra.mxu0 %v164
    %192 = vmatprep.subr.mxu0 %v163
    %193 = vmatpush1.msra.mxu0 %v162
    %194 = vmatprep.subr.mxu0 %v161
    %195 = vmatpush1.msra.mxu0 %v160
    %196 = vmatprep.subr.mxu0 %v159
    %197 = vmatpush1.msra.mxu0 %v158
    %198 = vmatprep.subr.mxu0 %v157
    %199 = vmatpush1.msra.mxu0 %v156
    %200 = vmatprep.subr.mxu0 %v155
    %201 = vmatpush1.msra.mxu0 %v154
    %202 = vmatprep.subr.mxu0 %v153
    %203 = vmatpush1.msra.mxu0 %v152
    %204 = vmatprep.subr.mxu0 0.0
    %205 = vmatpush2.msra.mxu0 0.0
    %206 = vmatprep.subr.mxu0 0.0
    %207 = vmatpush2.msra.mxu0 0.0
    %208 = vmatprep.subr.mxu0 0.0
    %209 = vmatpush2.msra.mxu0 0.0
    %210 = vmatprep.subr.mxu0 0.0
    %211 = vmatpush2.msra.mxu0 0.0
    %212 = vmatprep.subr.mxu0 0.0
    %213 = vmatpush2.msra.mxu0 0.0
    %214 = vmatprep.subr.mxu0 0.0
    %215 = vmatpush2.msra.mxu0 0.0
    %216 = vmatprep.subr.mxu0 0.0
    %217 = vmatpush2.msra.mxu0 0.0
    %218 = vmatprep.subr.mxu0 0.0
    %219 = vmatpush2.msra.mxu0 0.0
    %220 = vmatprep.subr.mxu0 0.0
    %221 = vmatpush2.msra.mxu0 0.0
    %222 = vmatprep.subr.mxu0 0.0
    %223 = vmatpush2.msra.mxu0 0.0
    %224 = vmatprep.subr.mxu0 0.0
    %225 = vmatpush2.msra.mxu0 0.0
    %226 = vmatprep.subr.mxu0 0.0
    %227 = vmatpush2.msra.mxu0 0.0
    %228 = vmatprep.subr.mxu0 0.0
    %229 = vmatpush2.msra.mxu0 0.0
    %230 = vmatprep.subr.mxu0 0.0
    %231 = vmatpush2.msra.mxu0 0.0
    %232 = vmatprep.subr.mxu0 0.0
    %233 = vmatpush2.msra.mxu0 0.0
    %234 = vmatprep.subr.mxu0 0.0
    %235 = vmatpush2.msra.mxu0 0.0
    %236 = vmatprep.mubr.f32.mxu0 0.0
    %237 = vmatmul.mubr.f32.gmra.mxu0 %v170
    %v238 = vpop.f32.mrf.mxu0
    %v239 = vadd.f32 0.0, %v238
    %v240 = vpop.f32.mrf.mxu0
    %v241 = vadd.f32 0.0, %v240
    %242 = vdwg.mxu0
    %v245 = vcombine.low %v239, %v241
    %v247 = vunpack.c.l.s4 1966171168
    %v248 = vunpack.c.0.s8 %v247
    %v249 = vlaneseq
    %v250 = vshrl.u32 %v249, 7
    %v251 = vsub.s32 %v248, %v250
    %v252 = vrot.slane %v245, %v251
    %v254 = vunpack.c.l.s4 1966171168
    %v255 = vunpack.c.0.s8 %v254
    %v256 = vlaneseq
    %v257 = vshrl.u32 %v256, 7
    %v258 = vsub.s32 %v255, %v257
    %v259 = vrot.slane %v252, %v258
    %v261 = vadd.f32 %v151, %v259
    %v262 = vxor.u32 %v261, 2147483648
    %v263 = vmul.f32 %v262, 1.442695
    %v264 = vpow.pop %v263
    %v265 = vadd.f32 %v264, 1.0
    %v266 = vrcp.pop %v265
    %v267 = vmul.f32 1.0, %v266
    %269 = vrot.lane.b32.xlu0 %v261, 64
    %v270 = vpop.permute.xlu0 %269
    %v271 = vrot.slane %v270, 1
    %v273 = vtanh.pop %v271
    %275 = vrot.lane.b32.xlu0 %v150, 64
    %v276 = vpop.permute.xlu0 %275
    %v278 = vmul.f32 %v267, %v276
    %v279 = vmul.f32 %v267, %v273
    %281 = vrot.lane.b32.xlu0 %v279, 64
    %v282 = vpop.permute.xlu0 %281
    %v284 = vadd.f32 %v278, %v282
    %v285 = vtanh.pop %v284
    %v287 = vrot.slane %v267, 1
    %290 = vrot.lane.b32.xlu0 %v285, 64
    %v291 = vpop.permute.xlu0 %290
    %v293 = vmul.f32 %v287, %v291
    %vm294 = vcmask 253952
    %295 = vst.msk [vmem:[#allocation3] sm:$0x1] %vm294, %v293
    %vm296 = vcmask 516352
    %297 = vst.msk [vmem:[#allocation3 + $0x7] sm:$0x1] %vm296, %v293
    %s298 = scalar_lea.vmem [#allocation2], 1
    %v299 = vld [vmem:[%s298] ss:$8 sm:$0x3]
    %v300 = vld [vmem:[#allocation5] sm:$0xff]
    %v301 = vld [vmem:[#allocation5 + $0x8] sm:$0xff]
    %v302 = vld [vmem:[#allocation5 + $0x10] sm:$0xff]
    %v303 = vld [vmem:[#allocation5 + $0x18] sm:$0xff]
    %v304 = vld [vmem:[#allocation5 + $0x20] sm:$0xff]
    %v305 = vld [vmem:[#allocation5 + $0x28] sm:$0xff]
    %v306 = vld [vmem:[#allocation5 + $0x30] sm:$0xff]
    %v307 = vld [vmem:[#allocation5 + $0x38] sm:$0xff]
    %v308 = vld [vmem:[#allocation5 + $0x40] sm:$0xff]
    %v309 = vld [vmem:[#allocation5 + $0x48] sm:$0xff]
    %v310 = vld [vmem:[#allocation5 + $0x50] sm:$0xff]
    %v311 = vld [vmem:[#allocation5 + $0x58] sm:$0xff]
    %v312 = vld [vmem:[#allocation5 + $0x60] sm:$0xff]
    %v313 = vld [vmem:[#allocation5 + $0x68] sm:$0xff]
    %v314 = vld [vmem:[#allocation5 + $0x70] sm:$0xff]
    %v315 = vld [vmem:[#allocation5 + $0x78] sm:$0xff]
    %v317 = vsel %vm168, %v293, 0
    %319 = vmatprep.subr.mxu0 0.0
    %320 = vmatpush1.msra.mxu0 0.0
    %321 = vmatprep.subr.mxu0 0.0
    %322 = vmatpush1.msra.mxu0 0.0
    %323 = vmatprep.subr.mxu0 0.0
    %324 = vmatpush1.msra.mxu0 0.0
    %325 = vmatprep.subr.mxu0 0.0
    %326 = vmatpush1.msra.mxu0 0.0
    %327 = vmatprep.subr.mxu0 0.0
    %328 = vmatpush1.msra.mxu0 0.0
    %329 = vmatprep.subr.mxu0 0.0
    %330 = vmatpush1.msra.mxu0 0.0
    %331 = vmatprep.subr.mxu0 0.0
    %332 = vmatpush1.msra.mxu0 0.0
    %333 = vmatprep.subr.mxu0 0.0
    %334 = vmatpush1.msra.mxu0 0.0
    %335 = vmatprep.subr.mxu0 %v315
    %336 = vmatpush1.msra.mxu0 %v314
    %337 = vmatprep.subr.mxu0 %v313
    %338 = vmatpush1.msra.mxu0 %v312
    %339 = vmatprep.subr.mxu0 %v311
    %340 = vmatpush1.msra.mxu0 %v310
    %341 = vmatprep.subr.mxu0 %v309
    %342 = vmatpush1.msra.mxu0 %v308
    %343 = vmatprep.subr.mxu0 %v307
    %344 = vmatpush1.msra.mxu0 %v306
    %345 = vmatprep.subr.mxu0 %v305
    %346 = vmatpush1.msra.mxu0 %v304
    %347 = vmatprep.subr.mxu0 %v303
    %348 = vmatpush1.msra.mxu0 %v302
    %349 = vmatprep.subr.mxu0 %v301
    %350 = vmatpush1.msra.mxu0 %v300
    %351 = vmatprep.subr.mxu0 0.0
    %352 = vmatpush2.msra.mxu0 0.0
    %353 = vmatprep.subr.mxu0 0.0
    %354 = vmatpush2.msra.mxu0 0.0
    %355 = vmatprep.subr.mxu0 0.0
    %356 = vmatpush2.msra.mxu0 0.0
    %357 = vmatprep.subr.mxu0 0.0
    %358 = vmatpush2.msra.mxu0 0.0
    %359 = vmatprep.subr.mxu0 0.0
    %360 = vmatpush2.msra.mxu0 0.0
    %361 = vmatprep.subr.mxu0 0.0
    %362 = vmatpush2.msra.mxu0 0.0
    %363 = vmatprep.subr.mxu0 0.0
    %364 = vmatpush2.msra.mxu0 0.0
    %365 = vmatprep.subr.mxu0 0.0
    %366 = vmatpush2.msra.mxu0 0.0
    %367 = vmatprep.subr.mxu0 0.0
    %368 = vmatpush2.msra.mxu0 0.0
    %369 = vmatprep.subr.mxu0 0.0
    %370 = vmatpush2.msra.mxu0 0.0
    %371 = vmatprep.subr.mxu0 0.0
    %372 = vmatpush2.msra.mxu0 0.0
    %373 = vmatprep.subr.mxu0 0.0
    %374 = vmatpush2.msra.mxu0 0.0
    %375 = vmatprep.subr.mxu0 0.0
    %376 = vmatpush2.msra.mxu0 0.0
    %377 = vmatprep.subr.mxu0 0.0
    %378 = vmatpush2.msra.mxu0 0.0
    %379 = vmatprep.subr.mxu0 0.0
    %380 = vmatpush2.msra.mxu0 0.0
    %381 = vmatprep.subr.mxu0 0.0
    %382 = vmatpush2.msra.mxu0 0.0
    %383 = vmatprep.mubr.f32.mxu0 0.0
    %384 = vmatmul.mubr.f32.gmra.mxu0 %v317
    %v385 = vpop.f32.mrf.mxu0
    %v386 = vadd.f32 0.0, %v385
    %v387 = vpop.f32.mrf.mxu0
    %v388 = vadd.f32 0.0, %v387
    %389 = vdwg.mxu0
    %v392 = vcombine.low %v386, %v388
    %v394 = vunpack.c.l.s4 1966171168
    %v395 = vunpack.c.0.s8 %v394
    %v396 = vlaneseq
    %v397 = vshrl.u32 %v396, 7
    %v398 = vsub.s32 %v395, %v397
    %v399 = vrot.slane %v392, %v398
    %v401 = vunpack.c.l.s4 1966171168
    %v402 = vunpack.c.0.s8 %v401
    %v403 = vlaneseq
    %v404 = vshrl.u32 %v403, 7
    %v405 = vsub.s32 %v402, %v404
    %v406 = vrot.slane %v399, %v405
    %v408 = vadd.f32 %v299, %v406
    %v409 = vxor.u32 %v408, 2147483648
    %v410 = vmul.f32 %v409, 1.442695
    %v411 = vpow.pop %v410
    %v412 = vadd.f32 %v411, 1.0
    %v413 = vrcp.pop %v412
    %v414 = vmul.f32 1.0, %v413
    %416 = vrot.lane.b32.xlu0 %v408, 64
    %v417 = vpop.permute.xlu0 %416
    %v418 = vrot.slane %v417, 1
    %v420 = vtanh.pop %v418
    %v421 = vmul.f32 %v414, %v284
    %v422 = vmul.f32 %v414, %v420
    %424 = vrot.lane.b32.xlu0 %v422, 64
    %v425 = vpop.permute.xlu0 %424
    %v427 = vadd.f32 %v421, %v425
    %v428 = vtanh.pop %v427
    %v430 = vrot.slane %v414, 1
    %433 = vrot.lane.b32.xlu0 %v428, 64
    %v434 = vpop.permute.xlu0 %433
    %v436 = vmul.f32 %v430, %v434
    %437 = vst.msk [vmem:[#allocation3 + $0x1] sm:$0x1] %vm294, %v436
    %438 = vst.msk [vmem:[#allocation3 + $0x6] sm:$0x1] %vm296, %v436
    %s439 = scalar_lea.vmem [#allocation2], 2
    %v440 = vld [vmem:[%s439] ss:$8 sm:$0x3]
    %v441 = vld [vmem:[#allocation5] sm:$0xff]
    %v442 = vld [vmem:[#allocation5 + $0x8] sm:$0xff]
    %v443 = vld [vmem:[#allocation5 + $0x10] sm:$0xff]
    %v444 = vld [vmem:[#allocation5 + $0x18] sm:$0xff]
    %v445 = vld [vmem:[#allocation5 + $0x20] sm:$0xff]
    %v446 = vld [vmem:[#allocation5 + $0x28] sm:$0xff]
    %v447 = vld [vmem:[#allocation5 + $0x30] sm:$0xff]
    %v448 = vld [vmem:[#allocation5 + $0x38] sm:$0xff]
    %v449 = vld [vmem:[#allocation5 + $0x40] sm:$0xff]
    %v450 = vld [vmem:[#allocation5 + $0x48] sm:$0xff]
    %v451 = vld [vmem:[#allocation5 + $0x50] sm:$0xff]
    %v452 = vld [vmem:[#allocation5 + $0x58] sm:$0xff]
    %v453 = vld [vmem:[#allocation5 + $0x60] sm:$0xff]
    %v454 = vld [vmem:[#allocation5 + $0x68] sm:$0xff]
    %v455 = vld [vmem:[#allocation5 + $0x70] sm:$0xff]
    %v456 = vld [vmem:[#allocation5 + $0x78] sm:$0xff]
    %v458 = vsel %vm168, %v436, 0
    %460 = vmatprep.subr.mxu0 0.0
    %461 = vmatpush1.msra.mxu0 0.0
    %462 = vmatprep.subr.mxu0 0.0
    %463 = vmatpush1.msra.mxu0 0.0
    %464 = vmatprep.subr.mxu0 0.0
    %465 = vmatpush1.msra.mxu0 0.0
    %466 = vmatprep.subr.mxu0 0.0
    %467 = vmatpush1.msra.mxu0 0.0
    %468 = vmatprep.subr.mxu0 0.0
    %469 = vmatpush1.msra.mxu0 0.0
    %470 = vmatprep.subr.mxu0 0.0
    %471 = vmatpush1.msra.mxu0 0.0
    %472 = vmatprep.subr.mxu0 0.0
    %473 = vmatpush1.msra.mxu0 0.0
    %474 = vmatprep.subr.mxu0 0.0
    %475 = vmatpush1.msra.mxu0 0.0
    %476 = vmatprep.subr.mxu0 %v456
    %477 = vmatpush1.msra.mxu0 %v455
    %478 = vmatprep.subr.mxu0 %v454
    %479 = vmatpush1.msra.mxu0 %v453
    %480 = vmatprep.subr.mxu0 %v452
    %481 = vmatpush1.msra.mxu0 %v451
    %482 = vmatprep.subr.mxu0 %v450
    %483 = vmatpush1.msra.mxu0 %v449
    %484 = vmatprep.subr.mxu0 %v448
    %485 = vmatpush1.msra.mxu0 %v447
    %486 = vmatprep.subr.mxu0 %v446
    %487 = vmatpush1.msra.mxu0 %v445
    %488 = vmatprep.subr.mxu0 %v444
    %489 = vmatpush1.msra.mxu0 %v443
    %490 = vmatprep.subr.mxu0 %v442
    %491 = vmatpush1.msra.mxu0 %v441
    %492 = vmatprep.subr.mxu0 0.0
    %493 = vmatpush2.msra.mxu0 0.0
    %494 = vmatprep.subr.mxu0 0.0
    %495 = vmatpush2.msra.mxu0 0.0
    %496 = vmatprep.subr.mxu0 0.0
    %497 = vmatpush2.msra.mxu0 0.0
    %498 = vmatprep.subr.mxu0 0.0
    %499 = vmatpush2.msra.mxu0 0.0
    %500 = vmatprep.subr.mxu0 0.0
    %501 = vmatpush2.msra.mxu0 0.0
    %502 = vmatprep.subr.mxu0 0.0
    %503 = vmatpush2.msra.mxu0 0.0
    %504 = vmatprep.subr.mxu0 0.0
    %505 = vmatpush2.msra.mxu0 0.0
    %506 = vmatprep.subr.mxu0 0.0
    %507 = vmatpush2.msra.mxu0 0.0
    %508 = vmatprep.subr.mxu0 0.0
    %509 = vmatpush2.msra.mxu0 0.0
    %510 = vmatprep.subr.mxu0 0.0
    %511 = vmatpush2.msra.mxu0 0.0
    %512 = vmatprep.subr.mxu0 0.0
    %513 = vmatpush2.msra.mxu0 0.0
    %514 = vmatprep.subr.mxu0 0.0
    %515 = vmatpush2.msra.mxu0 0.0
    %516 = vmatprep.subr.mxu0 0.0
    %517 = vmatpush2.msra.mxu0 0.0
    %518 = vmatprep.subr.mxu0 0.0
    %519 = vmatpush2.msra.mxu0 0.0
    %520 = vmatprep.subr.mxu0 0.0
    %521 = vmatpush2.msra.mxu0 0.0
    %522 = vmatprep.subr.mxu0 0.0
    %523 = vmatpush2.msra.mxu0 0.0
    %524 = vmatprep.mubr.f32.mxu0 0.0
    %525 = vmatmul.mubr.f32.gmra.mxu0 %v458
    %v526 = vpop.f32.mrf.mxu0
    %v527 = vadd.f32 0.0, %v526
    %v528 = vpop.f32.mrf.mxu0
    %v529 = vadd.f32 0.0, %v528
    %530 = vdwg.mxu0
    %v533 = vcombine.low %v527, %v529
    %v535 = vunpack.c.l.s4 1966171168
    %v536 = vunpack.c.0.s8 %v535
    %v537 = vlaneseq
    %v538 = vshrl.u32 %v537, 7
    %v539 = vsub.s32 %v536, %v538
    %v540 = vrot.slane %v533, %v539
    %v542 = vunpack.c.l.s4 1966171168
    %v543 = vunpack.c.0.s8 %v542
    %v544 = vlaneseq
    %v545 = vshrl.u32 %v544, 7
    %v546 = vsub.s32 %v543, %v545
    %v547 = vrot.slane %v540, %v546
    %v549 = vadd.f32 %v440, %v547
    %v550 = vxor.u32 %v549, 2147483648
    %v551 = vmul.f32 %v550, 1.442695
    %v552 = vpow.pop %v551
    %v553 = vadd.f32 %v552, 1.0
    %v554 = vrcp.pop %v553
    %v555 = vmul.f32 1.0, %v554
    %557 = vrot.lane.b32.xlu0 %v549, 64
    %v558 = vpop.permute.xlu0 %557
    %v559 = vrot.slane %v558, 1
    %v561 = vtanh.pop %v559
    %v562 = vmul.f32 %v555, %v427
    %v563 = vmul.f32 %v555, %v561
    %565 = vrot.lane.b32.xlu0 %v563, 64
    %v566 = vpop.permute.xlu0 %565
    %v568 = vadd.f32 %v562, %v566
    %v569 = vtanh.pop %v568
    %v571 = vrot.slane %v555, 1
    %574 = vrot.lane.b32.xlu0 %v569, 64
    %v575 = vpop.permute.xlu0 %574
    %v577 = vmul.f32 %v571, %v575
    %578 = vst.msk [vmem:[#allocation3 + $0x2] sm:$0x1] %vm294, %v577
    %579 = vst.msk [vmem:[#allocation3 + $0x5] sm:$0x1] %vm296, %v577
    %s580 = scalar_lea.vmem [#allocation2], 3
    %v581 = vld [vmem:[%s580] ss:$8 sm:$0x3]
    %v582 = vld [vmem:[#allocation5] sm:$0xff]
    %v583 = vld [vmem:[#allocation5 + $0x8] sm:$0xff]
    %v584 = vld [vmem:[#allocation5 + $0x10] sm:$0xff]
    %v585 = vld [vmem:[#allocation5 + $0x18] sm:$0xff]
    %v586 = vld [vmem:[#allocation5 + $0x20] sm:$0xff]
    %v587 = vld [vmem:[#allocation5 + $0x28] sm:$0xff]
    %v588 = vld [vmem:[#allocation5 + $0x30] sm:$0xff]
    %v589 = vld [vmem:[#allocation5 + $0x38] sm:$0xff]
    %v590 = vld [vmem:[#allocation5 + $0x40] sm:$0xff]
    %v591 = vld [vmem:[#allocation5 + $0x48] sm:$0xff]
    %v592 = vld [vmem:[#allocation5 + $0x50] sm:$0xff]
    %v593 = vld [vmem:[#allocation5 + $0x58] sm:$0xff]
    %v594 = vld [vmem:[#allocation5 + $0x60] sm:$0xff]
    %v595 = vld [vmem:[#allocation5 + $0x68] sm:$0xff]
    %v596 = vld [vmem:[#allocation5 + $0x70] sm:$0xff]
    %v597 = vld [vmem:[#allocation5 + $0x78] sm:$0xff]
    %v599 = vsel %vm168, %v577, 0
    %601 = vmatprep.subr.mxu0 0.0
    %602 = vmatpush1.msra.mxu0 0.0
    %603 = vmatprep.subr.mxu0 0.0
    %604 = vmatpush1.msra.mxu0 0.0
    %605 = vmatprep.subr.mxu0 0.0
    %606 = vmatpush1.msra.mxu0 0.0
    %607 = vmatprep.subr.mxu0 0.0
    %608 = vmatpush1.msra.mxu0 0.0
    %609 = vmatprep.subr.mxu0 0.0
    %610 = vmatpush1.msra.mxu0 0.0
    %611 = vmatprep.subr.mxu0 0.0
    %612 = vmatpush1.msra.mxu0 0.0
    %613 = vmatprep.subr.mxu0 0.0
    %614 = vmatpush1.msra.mxu0 0.0
    %615 = vmatprep.subr.mxu0 0.0
    %616 = vmatpush1.msra.mxu0 0.0
    %617 = vmatprep.subr.mxu0 %v597
    %618 = vmatpush1.msra.mxu0 %v596
    %619 = vmatprep.subr.mxu0 %v595
    %620 = vmatpush1.msra.mxu0 %v594
    %621 = vmatprep.subr.mxu0 %v593
    %622 = vmatpush1.msra.mxu0 %v592
    %623 = vmatprep.subr.mxu0 %v591
    %624 = vmatpush1.msra.mxu0 %v590
    %625 = vmatprep.subr.mxu0 %v589
    %626 = vmatpush1.msra.mxu0 %v588
    %627 = vmatprep.subr.mxu0 %v587
    %628 = vmatpush1.msra.mxu0 %v586
    %629 = vmatprep.subr.mxu0 %v585
    %630 = vmatpush1.msra.mxu0 %v584
    %631 = vmatprep.subr.mxu0 %v583
    %632 = vmatpush1.msra.mxu0 %v582
    %633 = vmatprep.subr.mxu0 0.0
    %634 = vmatpush2.msra.mxu0 0.0
    %635 = vmatprep.subr.mxu0 0.0
    %636 = vmatpush2.msra.mxu0 0.0
    %637 = vmatprep.subr.mxu0 0.0
    %638 = vmatpush2.msra.mxu0 0.0
    %639 = vmatprep.subr.mxu0 0.0
    %640 = vmatpush2.msra.mxu0 0.0
    %641 = vmatprep.subr.mxu0 0.0
    %642 = vmatpush2.msra.mxu0 0.0
    %643 = vmatprep.subr.mxu0 0.0
    %644 = vmatpush2.msra.mxu0 0.0
    %645 = vmatprep.subr.mxu0 0.0
    %646 = vmatpush2.msra.mxu0 0.0
    %647 = vmatprep.subr.mxu0 0.0
    %648 = vmatpush2.msra.mxu0 0.0
    %649 = vmatprep.subr.mxu0 0.0
    %650 = vmatpush2.msra.mxu0 0.0
    %651 = vmatprep.subr.mxu0 0.0
    %652 = vmatpush2.msra.mxu0 0.0
    %653 = vmatprep.subr.mxu0 0.0
    %654 = vmatpush2.msra.mxu0 0.0
    %655 = vmatprep.subr.mxu0 0.0
    %656 = vmatpush2.msra.mxu0 0.0
    %657 = vmatprep.subr.mxu0 0.0
    %658 = vmatpush2.msra.mxu0 0.0
    %659 = vmatprep.subr.mxu0 0.0
    %660 = vmatpush2.msra.mxu0 0.0
    %661 = vmatprep.subr.mxu0 0.0
    %662 = vmatpush2.msra.mxu0 0.0
    %663 = vmatprep.subr.mxu0 0.0
    %664 = vmatpush2.msra.mxu0 0.0
    %665 = vmatprep.mubr.f32.mxu0 0.0
    %666 = vmatmul.mubr.f32.gmra.mxu0 %v599
    %v667 = vpop.f32.mrf.mxu0
    %v668 = vadd.f32 0.0, %v667
    %v669 = vpop.f32.mrf.mxu0
    %v670 = vadd.f32 0.0, %v669
    %671 = vdwg.mxu0
    %v674 = vcombine.low %v668, %v670
    %v676 = vunpack.c.l.s4 1966171168
    %v677 = vunpack.c.0.s8 %v676
    %v678 = vlaneseq
    %v679 = vshrl.u32 %v678, 7
    %v680 = vsub.s32 %v677, %v679
    %v681 = vrot.slane %v674, %v680
    %v683 = vunpack.c.l.s4 1966171168
    %v684 = vunpack.c.0.s8 %v683
    %v685 = vlaneseq
    %v686 = vshrl.u32 %v685, 7
    %v687 = vsub.s32 %v684, %v686
    %v688 = vrot.slane %v681, %v687
    %v690 = vadd.f32 %v581, %v688
    %v691 = vxor.u32 %v690, 2147483648
    %v692 = vmul.f32 %v691, 1.442695
    %v693 = vpow.pop %v692
    %v694 = vadd.f32 %v693, 1.0
    %v695 = vrcp.pop %v694
    %v696 = vmul.f32 1.0, %v695
    %698 = vrot.lane.b32.xlu0 %v690, 64
    %v699 = vpop.permute.xlu0 %698
    %v700 = vrot.slane %v699, 1
    %v702 = vtanh.pop %v700
    %v703 = vmul.f32 %v696, %v568
    %v704 = vmul.f32 %v696, %v702
    %706 = vrot.lane.b32.xlu0 %v704, 64
    %v707 = vpop.permute.xlu0 %706
    %v709 = vadd.f32 %v703, %v707
    %v710 = vtanh.pop %v709
    %v712 = vrot.slane %v696, 1
    %715 = vrot.lane.b32.xlu0 %v710, 64
    %v716 = vpop.permute.xlu0 %715
    %v718 = vmul.f32 %v712, %v716
    %719 = vst.msk [vmem:[#allocation3 + $0x3] sm:$0x1] %vm294, %v718
    %720 = vst.msk [vmem:[#allocation3 + $0x4] sm:$0x1] %vm296, %v718
    %s721 = scalar_lea.vmem [#allocation2], 4
    %v722 = vld [vmem:[%s721] ss:$8 sm:$0x3]
    %v723 = vld [vmem:[#allocation5] sm:$0xff]
    %v724 = vld [vmem:[#allocation5 + $0x8] sm:$0xff]
    %v725 = vld [vmem:[#allocation5 + $0x10] sm:$0xff]
    %v726 = vld [vmem:[#allocation5 + $0x18] sm:$0xff]
    %v727 = vld [vmem:[#allocation5 + $0x20] sm:$0xff]
    %v728 = vld [vmem:[#allocation5 + $0x28] sm:$0xff]
    %v729 = vld [vmem:[#allocation5 + $0x30] sm:$0xff]
    %v730 = vld [vmem:[#allocation5 + $0x38] sm:$0xff]
    %v731 = vld [vmem:[#allocation5 + $0x40] sm:$0xff]
    %v732 = vld [vmem:[#allocation5 + $0x48] sm:$0xff]
    %v733 = vld [vmem:[#allocation5 + $0x50] sm:$0xff]
    %v734 = vld [vmem:[#allocation5 + $0x58] sm:$0xff]
    %v735 = vld [vmem:[#allocation5 + $0x60] sm:$0xff]
    %v736 = vld [vmem:[#allocation5 + $0x68] sm:$0xff]
    %v737 = vld [vmem:[#allocation5 + $0x70] sm:$0xff]
    %v738 = vld [vmem:[#allocation5 + $0x78] sm:$0xff]
    %v740 = vsel %vm168, %v718, 0
    %742 = vmatprep.subr.mxu0 0.0
    %743 = vmatpush1.msra.mxu0 0.0
    %744 = vmatprep.subr.mxu0 0.0
    %745 = vmatpush1.msra.mxu0 0.0
    %746 = vmatprep.subr.mxu0 0.0
    %747 = vmatpush1.msra.mxu0 0.0
    %748 = vmatprep.subr.mxu0 0.0
    %749 = vmatpush1.msra.mxu0 0.0
    %750 = vmatprep.subr.mxu0 0.0
    %751 = vmatpush1.msra.mxu0 0.0
    %752 = vmatprep.subr.mxu0 0.0
    %753 = vmatpush1.msra.mxu0 0.0
    %754 = vmatprep.subr.mxu0 0.0
    %755 = vmatpush1.msra.mxu0 0.0
    %756 = vmatprep.subr.mxu0 0.0
    %757 = vmatpush1.msra.mxu0 0.0
    %758 = vmatprep.subr.mxu0 %v738
    %759 = vmatpush1.msra.mxu0 %v737
    %760 = vmatprep.subr.mxu0 %v736
    %761 = vmatpush1.msra.mxu0 %v735
    %762 = vmatprep.subr.mxu0 %v734
    %763 = vmatpush1.msra.mxu0 %v733
    %764 = vmatprep.subr.mxu0 %v732
    %765 = vmatpush1.msra.mxu0 %v731
    %766 = vmatprep.subr.mxu0 %v730
    %767 = vmatpush1.msra.mxu0 %v729
    %768 = vmatprep.subr.mxu0 %v728
    %769 = vmatpush1.msra.mxu0 %v727
    %770 = vmatprep.subr.mxu0 %v726
    %771 = vmatpush1.msra.mxu0 %v725
    %772 = vmatprep.subr.mxu0 %v724
    %773 = vmatpush1.msra.mxu0 %v723
    %774 = vmatprep.subr.mxu0 0.0
    %775 = vmatpush2.msra.mxu0 0.0
    %776 = vmatprep.subr.mxu0 0.0
    %777 = vmatpush2.msra.mxu0 0.0
    %778 = vmatprep.subr.mxu0 0.0
    %779 = vmatpush2.msra.mxu0 0.0
    %780 = vmatprep.subr.mxu0 0.0
    %781 = vmatpush2.msra.mxu0 0.0
    %782 = vmatprep.subr.mxu0 0.0
    %783 = vmatpush2.msra.mxu0 0.0
    %784 = vmatprep.subr.mxu0 0.0
    %785 = vmatpush2.msra.mxu0 0.0
    %786 = vmatprep.subr.mxu0 0.0
    %787 = vmatpush2.msra.mxu0 0.0
    %788 = vmatprep.subr.mxu0 0.0
    %789 = vmatpush2.msra.mxu0 0.0
    %790 = vmatprep.subr.mxu0 0.0
    %791 = vmatpush2.msra.mxu0 0.0
    %792 = vmatprep.subr.mxu0 0.0
    %793 = vmatpush2.msra.mxu0 0.0
    %794 = vmatprep.subr.mxu0 0.0
    %795 = vmatpush2.msra.mxu0 0.0
    %796 = vmatprep.subr.mxu0 0.0
    %797 = vmatpush2.msra.mxu0 0.0
    %798 = vmatprep.subr.mxu0 0.0
    %799 = vmatpush2.msra.mxu0 0.0
    %800 = vmatprep.subr.mxu0 0.0
    %801 = vmatpush2.msra.mxu0 0.0
    %802 = vmatprep.subr.mxu0 0.0
    %803 = vmatpush2.msra.mxu0 0.0
    %804 = vmatprep.subr.mxu0 0.0
    %805 = vmatpush2.msra.mxu0 0.0
    %806 = vmatprep.mubr.f32.mxu0 0.0
    %807 = vmatmul.mubr.f32.gmra.mxu0 %v740
    %v808 = vpop.f32.mrf.mxu0
    %v809 = vadd.f32 0.0, %v808
    %v810 = vpop.f32.mrf.mxu0
    %v811 = vadd.f32 0.0, %v810
    %812 = vdwg.mxu0
    %v815 = vcombine.low %v809, %v811
    %v817 = vunpack.c.l.s4 1966171168
    %v818 = vunpack.c.0.s8 %v817
    %v819 = vlaneseq
    %v820 = vshrl.u32 %v819, 7
    %v821 = vsub.s32 %v818, %v820
    %v822 = vrot.slane %v815, %v821
    %v824 = vunpack.c.l.s4 1966171168
    %v825 = vunpack.c.0.s8 %v824
    %v826 = vlaneseq
    %v827 = vshrl.u32 %v826, 7
    %v828 = vsub.s32 %v825, %v827
    %v829 = vrot.slane %v822, %v828
    %v831 = vadd.f32 %v722, %v829
    %v832 = vxor.u32 %v831, 2147483648
    %v833 = vmul.f32 %v832, 1.442695
    %v834 = vpow.pop %v833
    %v835 = vadd.f32 %v834, 1.0
    %v836 = vrcp.pop %v835
    %v837 = vmul.f32 1.0, %v836
    %839 = vrot.lane.b32.xlu0 %v831, 64
    %v840 = vpop.permute.xlu0 %839
    %v841 = vrot.slane %v840, 1
    %v843 = vtanh.pop %v841
    %v844 = vmul.f32 %v837, %v709
    %v845 = vmul.f32 %v837, %v843
    %847 = vrot.lane.b32.xlu0 %v845, 64
    %v848 = vpop.permute.xlu0 %847
    %v850 = vadd.f32 %v844, %v848
    %v851 = vtanh.pop %v850
    %v853 = vrot.slane %v837, 1
    %856 = vrot.lane.b32.xlu0 %v851, 64
    %v857 = vpop.permute.xlu0 %856
    %v859 = vmul.f32 %v853, %v857
    %860 = vst.msk [vmem:[#allocation3 + $0x4] sm:$0x1] %vm294, %v859
    %861 = vst.msk [vmem:[#allocation3 + $0x3] sm:$0x1] %vm296, %v859
    %s862 = scalar_lea.vmem [#allocation2], 5
    %v863 = vld [vmem:[%s862] ss:$8 sm:$0x3]
    %v864 = vld [vmem:[#allocation5] sm:$0xff]
    %v865 = vld [vmem:[#allocation5 + $0x8] sm:$0xff]
    %v866 = vld [vmem:[#allocation5 + $0x10] sm:$0xff]
    %v867 = vld [vmem:[#allocation5 + $0x18] sm:$0xff]
    %v868 = vld [vmem:[#allocation5 + $0x20] sm:$0xff]
    %v869 = vld [vmem:[#allocation5 + $0x28] sm:$0xff]
    %v870 = vld [vmem:[#allocation5 + $0x30] sm:$0xff]
    %v871 = vld [vmem:[#allocation5 + $0x38] sm:$0xff]
    %v872 = vld [vmem:[#allocation5 + $0x40] sm:$0xff]
    %v873 = vld [vmem:[#allocation5 + $0x48] sm:$0xff]
    %v874 = vld [vmem:[#allocation5 + $0x50] sm:$0xff]
    %v875 = vld [vmem:[#allocation5 + $0x58] sm:$0xff]
    %v876 = vld [vmem:[#allocation5 + $0x60] sm:$0xff]
    %v877 = vld [vmem:[#allocation5 + $0x68] sm:$0xff]
    %v878 = vld [vmem:[#allocation5 + $0x70] sm:$0xff]
    %v879 = vld [vmem:[#allocation5 + $0x78] sm:$0xff]
    %v881 = vsel %vm168, %v859, 0
    %883 = vmatprep.subr.mxu0 0.0
    %884 = vmatpush1.msra.mxu0 0.0
    %885 = vmatprep.subr.mxu0 0.0
    %886 = vmatpush1.msra.mxu0 0.0
    %887 = vmatprep.subr.mxu0 0.0
    %888 = vmatpush1.msra.mxu0 0.0
    %889 = vmatprep.subr.mxu0 0.0
    %890 = vmatpush1.msra.mxu0 0.0
    %891 = vmatprep.subr.mxu0 0.0
    %892 = vmatpush1.msra.mxu0 0.0
    %893 = vmatprep.subr.mxu0 0.0
    %894 = vmatpush1.msra.mxu0 0.0
    %895 = vmatprep.subr.mxu0 0.0
    %896 = vmatpush1.msra.mxu0 0.0
    %897 = vmatprep.subr.mxu0 0.0
    %898 = vmatpush1.msra.mxu0 0.0
    %899 = vmatprep.subr.mxu0 %v879
    %900 = vmatpush1.msra.mxu0 %v878
    %901 = vmatprep.subr.mxu0 %v877
    %902 = vmatpush1.msra.mxu0 %v876
    %903 = vmatprep.subr.mxu0 %v875
    %904 = vmatpush1.msra.mxu0 %v874
    %905 = vmatprep.subr.mxu0 %v873
    %906 = vmatpush1.msra.mxu0 %v872
    %907 = vmatprep.subr.mxu0 %v871
    %908 = vmatpush1.msra.mxu0 %v870
    %909 = vmatprep.subr.mxu0 %v869
    %910 = vmatpush1.msra.mxu0 %v868
    %911 = vmatprep.subr.mxu0 %v867
    %912 = vmatpush1.msra.mxu0 %v866
    %913 = vmatprep.subr.mxu0 %v865
    %914 = vmatpush1.msra.mxu0 %v864
    %915 = vmatprep.subr.mxu0 0.0
    %916 = vmatpush2.msra.mxu0 0.0
    %917 = vmatprep.subr.mxu0 0.0
    %918 = vmatpush2.msra.mxu0 0.0
    %919 = vmatprep.subr.mxu0 0.0
    %920 = vmatpush2.msra.mxu0 0.0
    %921 = vmatprep.subr.mxu0 0.0
    %922 = vmatpush2.msra.mxu0 0.0
    %923 = vmatprep.subr.mxu0 0.0
    %924 = vmatpush2.msra.mxu0 0.0
    %925 = vmatprep.subr.mxu0 0.0
    %926 = vmatpush2.msra.mxu0 0.0
    %927 = vmatprep.subr.mxu0 0.0
    %928 = vmatpush2.msra.mxu0 0.0
    %929 = vmatprep.subr.mxu0 0.0
    %930 = vmatpush2.msra.mxu0 0.0
    %931 = vmatprep.subr.mxu0 0.0
    %932 = vmatpush2.msra.mxu0 0.0
    %933 = vmatprep.subr.mxu0 0.0
    %934 = vmatpush2.msra.mxu0 0.0
    %935 = vmatprep.subr.mxu0 0.0
    %936 = vmatpush2.msra.mxu0 0.0
    %937 = vmatprep.subr.mxu0 0.0
    %938 = vmatpush2.msra.mxu0 0.0
    %939 = vmatprep.subr.mxu0 0.0
    %940 = vmatpush2.msra.mxu0 0.0
    %941 = vmatprep.subr.mxu0 0.0
    %942 = vmatpush2.msra.mxu0 0.0
    %943 = vmatprep.subr.mxu0 0.0
    %944 = vmatpush2.msra.mxu0 0.0
    %945 = vmatprep.subr.mxu0 0.0
    %946 = vmatpush2.msra.mxu0 0.0
    %947 = vmatprep.mubr.f32.mxu0 0.0
    %948 = vmatmul.mubr.f32.gmra.mxu0 %v881
    %v949 = vpop.f32.mrf.mxu0
    %v950 = vadd.f32 0.0, %v949
    %v951 = vpop.f32.mrf.mxu0
    %v952 = vadd.f32 0.0, %v951
    %953 = vdwg.mxu0
    %v956 = vcombine.low %v950, %v952
    %v958 = vunpack.c.l.s4 1966171168
    %v959 = vunpack.c.0.s8 %v958
    %v960 = vlaneseq
    %v961 = vshrl.u32 %v960, 7
    %v962 = vsub.s32 %v959, %v961
    %v963 = vrot.slane %v956, %v962
    %v965 = vunpack.c.l.s4 1966171168
    %v966 = vunpack.c.0.s8 %v965
    %v967 = vlaneseq
    %v968 = vshrl.u32 %v967, 7
    %v969 = vsub.s32 %v966, %v968
    %v970 = vrot.slane %v963, %v969
    %v972 = vadd.f32 %v863, %v970
    %v973 = vxor.u32 %v972, 2147483648
    %v974 = vmul.f32 %v973, 1.442695
    %v975 = vpow.pop %v974
    %v976 = vadd.f32 %v975, 1.0
    %v977 = vrcp.pop %v976
    %v978 = vmul.f32 1.0, %v977
    %980 = vrot.lane.b32.xlu0 %v972, 64
    %v981 = vpop.permute.xlu0 %980
    %v982 = vrot.slane %v981, 1
    %v984 = vtanh.pop %v982
    %v985 = vmul.f32 %v978, %v850
    %v986 = vmul.f32 %v978, %v984
    %988 = vrot.lane.b32.xlu0 %v986, 64
    %v989 = vpop.permute.xlu0 %988
    %v991 = vadd.f32 %v985, %v989
    %v992 = vtanh.pop %v991
    %v994 = vrot.slane %v978, 1
    %997 = vrot.lane.b32.xlu0 %v992, 64
    %v998 = vpop.permute.xlu0 %997
    %v1000 = vmul.f32 %v994, %v998
    %1001 = vst.msk [vmem:[#allocation3 + $0x5] sm:$0x1] %vm294, %v1000
    %1002 = vst.msk [vmem:[#allocation3 + $0x2] sm:$0x1] %vm296, %v1000
    %s1003 = scalar_lea.vmem [#allocation2], 6
    %v1004 = vld [vmem:[%s1003] ss:$8 sm:$0x3]
    %v1005 = vld [vmem:[#allocation5] sm:$0xff]
    %v1006 = vld [vmem:[#allocation5 + $0x8] sm:$0xff]
    %v1007 = vld [vmem:[#allocation5 + $0x10] sm:$0xff]
    %v1008 = vld [vmem:[#allocation5 + $0x18] sm:$0xff]
    %v1009 = vld [vmem:[#allocation5 + $0x20] sm:$0xff]
    %v1010 = vld [vmem:[#allocation5 + $0x28] sm:$0xff]
    %v1011 = vld [vmem:[#allocation5 + $0x30] sm:$0xff]
    %v1012 = vld [vmem:[#allocation5 + $0x38] sm:$0xff]
    %v1013 = vld [vmem:[#allocation5 + $0x40] sm:$0xff]
    %v1014 = vld [vmem:[#allocation5 + $0x48] sm:$0xff]
    %v1015 = vld [vmem:[#allocation5 + $0x50] sm:$0xff]
    %v1016 = vld [vmem:[#allocation5 + $0x58] sm:$0xff]
    %v1017 = vld [vmem:[#allocation5 + $0x60] sm:$0xff]
    %v1018 = vld [vmem:[#allocation5 + $0x68] sm:$0xff]
    %v1019 = vld [vmem:[#allocation5 + $0x70] sm:$0xff]
    %v1020 = vld [vmem:[#allocation5 + $0x78] sm:$0xff]
    %v1022 = vsel %vm168, %v1000, 0
    %1024 = vmatprep.subr.mxu0 0.0
    %1025 = vmatpush1.msra.mxu0 0.0
    %1026 = vmatprep.subr.mxu0 0.0
    %1027 = vmatpush1.msra.mxu0 0.0
    %1028 = vmatprep.subr.mxu0 0.0
    %1029 = vmatpush1.msra.mxu0 0.0
    %1030 = vmatprep.subr.mxu0 0.0
    %1031 = vmatpush1.msra.mxu0 0.0
    %1032 = vmatprep.subr.mxu0 0.0
    %1033 = vmatpush1.msra.mxu0 0.0
    %1034 = vmatprep.subr.mxu0 0.0
    %1035 = vmatpush1.msra.mxu0 0.0
    %1036 = vmatprep.subr.mxu0 0.0
    %1037 = vmatpush1.msra.mxu0 0.0
    %1038 = vmatprep.subr.mxu0 0.0
    %1039 = vmatpush1.msra.mxu0 0.0
    %1040 = vmatprep.subr.mxu0 %v1020
    %1041 = vmatpush1.msra.mxu0 %v1019
    %1042 = vmatprep.subr.mxu0 %v1018
    %1043 = vmatpush1.msra.mxu0 %v1017
    %1044 = vmatprep.subr.mxu0 %v1016
    %1045 = vmatpush1.msra.mxu0 %v1015
    %1046 = vmatprep.subr.mxu0 %v1014
    %1047 = vmatpush1.msra.mxu0 %v1013
    %1048 = vmatprep.subr.mxu0 %v1012
    %1049 = vmatpush1.msra.mxu0 %v1011
    %1050 = vmatprep.subr.mxu0 %v1010
    %1051 = vmatpush1.msra.mxu0 %v1009
    %1052 = vmatprep.subr.mxu0 %v1008
    %1053 = vmatpush1.msra.mxu0 %v1007
    %1054 = vmatprep.subr.mxu0 %v1006
    %1055 = vmatpush1.msra.mxu0 %v1005
    %1056 = vmatprep.subr.mxu0 0.0
    %1057 = vmatpush2.msra.mxu0 0.0
    %1058 = vmatprep.subr.mxu0 0.0
    %1059 = vmatpush2.msra.mxu0 0.0
    %1060 = vmatprep.subr.mxu0 0.0
    %1061 = vmatpush2.msra.mxu0 0.0
    %1062 = vmatprep.subr.mxu0 0.0
    %1063 = vmatpush2.msra.mxu0 0.0
    %1064 = vmatprep.subr.mxu0 0.0
    %1065 = vmatpush2.msra.mxu0 0.0
    %1066 = vmatprep.subr.mxu0 0.0
    %1067 = vmatpush2.msra.mxu0 0.0
    %1068 = vmatprep.subr.mxu0 0.0
    %1069 = vmatpush2.msra.mxu0 0.0
    %1070 = vmatprep.subr.mxu0 0.0
    %1071 = vmatpush2.msra.mxu0 0.0
    %1072 = vmatprep.subr.mxu0 0.0
    %1073 = vmatpush2.msra.mxu0 0.0
    %1074 = vmatprep.subr.mxu0 0.0
    %1075 = vmatpush2.msra.mxu0 0.0
    %1076 = vmatprep.subr.mxu0 0.0
    %1077 = vmatpush2.msra.mxu0 0.0
    %1078 = vmatprep.subr.mxu0 0.0
    %1079 = vmatpush2.msra.mxu0 0.0
    %1080 = vmatprep.subr.mxu0 0.0
    %1081 = vmatpush2.msra.mxu0 0.0
    %1082 = vmatprep.subr.mxu0 0.0
    %1083 = vmatpush2.msra.mxu0 0.0
    %1084 = vmatprep.subr.mxu0 0.0
    %1085 = vmatpush2.msra.mxu0 0.0
    %1086 = vmatprep.subr.mxu0 0.0
    %1087 = vmatpush2.msra.mxu0 0.0
    %1088 = vmatprep.mubr.f32.mxu0 0.0
    %1089 = vmatmul.mubr.f32.gmra.mxu0 %v1022
    %v1090 = vpop.f32.mrf.mxu0
    %v1091 = vadd.f32 0.0, %v1090
    %v1092 = vpop.f32.mrf.mxu0
    %v1093 = vadd.f32 0.0, %v1092
    %1094 = vdwg.mxu0
    %v1097 = vcombine.low %v1091, %v1093
    %v1099 = vunpack.c.l.s4 1966171168
    %v1100 = vunpack.c.0.s8 %v1099
    %v1101 = vlaneseq
    %v1102 = vshrl.u32 %v1101, 7
    %v1103 = vsub.s32 %v1100, %v1102
    %v1104 = vrot.slane %v1097, %v1103
    %v1106 = vunpack.c.l.s4 1966171168
    %v1107 = vunpack.c.0.s8 %v1106
    %v1108 = vlaneseq
    %v1109 = vshrl.u32 %v1108, 7
    %v1110 = vsub.s32 %v1107, %v1109
    %v1111 = vrot.slane %v1104, %v1110
    %v1113 = vadd.f32 %v1004, %v1111
    %v1114 = vxor.u32 %v1113, 2147483648
    %v1115 = vmul.f32 %v1114, 1.442695
    %v1116 = vpow.pop %v1115
    %v1117 = vadd.f32 %v1116, 1.0
    %v1118 = vrcp.pop %v1117
    %v1119 = vmul.f32 1.0, %v1118
    %1121 = vrot.lane.b32.xlu0 %v1113, 64
    %v1122 = vpop.permute.xlu0 %1121
    %v1123 = vrot.slane %v1122, 1
    %v1125 = vtanh.pop %v1123
    %v1126 = vmul.f32 %v1119, %v991
    %v1127 = vmul.f32 %v1119, %v1125
    %1129 = vrot.lane.b32.xlu0 %v1127, 64
    %v1130 = vpop.permute.xlu0 %1129
    %v1132 = vadd.f32 %v1126, %v1130
    %v1133 = vtanh.pop %v1132
    %v1135 = vrot.slane %v1119, 1
    %1138 = vrot.lane.b32.xlu0 %v1133, 64
    %v1139 = vpop.permute.xlu0 %1138
    %v1141 = vmul.f32 %v1135, %v1139
    %1142 = vst.msk [vmem:[#allocation3 + $0x6] sm:$0x1] %vm294, %v1141
    %1143 = vst.msk [vmem:[#allocation3 + $0x1] sm:$0x1] %vm296, %v1141
    %s1144 = scalar_lea.vmem [#allocation2], 7
    %v1145 = vld [vmem:[%s1144] ss:$8 sm:$0x3]
    %v1146 = vld [vmem:[#allocation5] sm:$0xff]
    %v1147 = vld [vmem:[#allocation5 + $0x8] sm:$0xff]
    %v1148 = vld [vmem:[#allocation5 + $0x10] sm:$0xff]
    %v1149 = vld [vmem:[#allocation5 + $0x18] sm:$0xff]
    %v1150 = vld [vmem:[#allocation5 + $0x20] sm:$0xff]
    %v1151 = vld [vmem:[#allocation5 + $0x28] sm:$0xff]
    %v1152 = vld [vmem:[#allocation5 + $0x30] sm:$0xff]
    %v1153 = vld [vmem:[#allocation5 + $0x38] sm:$0xff]
    %v1154 = vld [vmem:[#allocation5 + $0x40] sm:$0xff]
    %v1155 = vld [vmem:[#allocation5 + $0x48] sm:$0xff]
    %v1156 = vld [vmem:[#allocation5 + $0x50] sm:$0xff]
    %v1157 = vld [vmem:[#allocation5 + $0x58] sm:$0xff]
    %v1158 = vld [vmem:[#allocation5 + $0x60] sm:$0xff]
    %v1159 = vld [vmem:[#allocation5 + $0x68] sm:$0xff]
    %v1160 = vld [vmem:[#allocation5 + $0x70] sm:$0xff]
    %v1161 = vld [vmem:[#allocation5 + $0x78] sm:$0xff]
    %v1163 = vsel %vm168, %v1141, 0
    %1165 = vmatprep.subr.mxu0 0.0
    %1166 = vmatpush1.msra.mxu0 0.0
    %1167 = vmatprep.subr.mxu0 0.0
    %1168 = vmatpush1.msra.mxu0 0.0
    %1169 = vmatprep.subr.mxu0 0.0
    %1170 = vmatpush1.msra.mxu0 0.0
    %1171 = vmatprep.subr.mxu0 0.0
    %1172 = vmatpush1.msra.mxu0 0.0
    %1173 = vmatprep.subr.mxu0 0.0
    %1174 = vmatpush1.msra.mxu0 0.0
    %1175 = vmatprep.subr.mxu0 0.0
    %1176 = vmatpush1.msra.mxu0 0.0
    %1177 = vmatprep.subr.mxu0 0.0
    %1178 = vmatpush1.msra.mxu0 0.0
    %1179 = vmatprep.subr.mxu0 0.0
    %1180 = vmatpush1.msra.mxu0 0.0
    %1181 = vmatprep.subr.mxu0 %v1161
    %1182 = vmatpush1.msra.mxu0 %v1160
    %1183 = vmatprep.subr.mxu0 %v1159
    %1184 = vmatpush1.msra.mxu0 %v1158
    %1185 = vmatprep.subr.mxu0 %v1157
    %1186 = vmatpush1.msra.mxu0 %v1156
    %1187 = vmatprep.subr.mxu0 %v1155
    %1188 = vmatpush1.msra.mxu0 %v1154
    %1189 = vmatprep.subr.mxu0 %v1153
    %1190 = vmatpush1.msra.mxu0 %v1152
    %1191 = vmatprep.subr.mxu0 %v1151
    %1192 = vmatpush1.msra.mxu0 %v1150
    %1193 = vmatprep.subr.mxu0 %v1149
    %1194 = vmatpush1.msra.mxu0 %v1148
    %1195 = vmatprep.subr.mxu0 %v1147
    %1196 = vmatpush1.msra.mxu0 %v1146
    %1197 = vmatprep.subr.mxu0 0.0
    %1198 = vmatpush2.msra.mxu0 0.0
    %1199 = vmatprep.subr.mxu0 0.0
    %1200 = vmatpush2.msra.mxu0 0.0
    %1201 = vmatprep.subr.mxu0 0.0
    %1202 = vmatpush2.msra.mxu0 0.0
    %1203 = vmatprep.subr.mxu0 0.0
    %1204 = vmatpush2.msra.mxu0 0.0
    %1205 = vmatprep.subr.mxu0 0.0
    %1206 = vmatpush2.msra.mxu0 0.0
    %1207 = vmatprep.subr.mxu0 0.0
    %1208 = vmatpush2.msra.mxu0 0.0
    %1209 = vmatprep.subr.mxu0 0.0
    %1210 = vmatpush2.msra.mxu0 0.0
    %1211 = vmatprep.subr.mxu0 0.0
    %1212 = vmatpush2.msra.mxu0 0.0
    %1213 = vmatprep.subr.mxu0 0.0
    %1214 = vmatpush2.msra.mxu0 0.0
    %1215 = vmatprep.subr.mxu0 0.0
    %1216 = vmatpush2.msra.mxu0 0.0
    %1217 = vmatprep.subr.mxu0 0.0
    %1218 = vmatpush2.msra.mxu0 0.0
    %1219 = vmatprep.subr.mxu0 0.0
    %1220 = vmatpush2.msra.mxu0 0.0
    %1221 = vmatprep.subr.mxu0 0.0
    %1222 = vmatpush2.msra.mxu0 0.0
    %1223 = vmatprep.subr.mxu0 0.0
    %1224 = vmatpush2.msra.mxu0 0.0
    %1225 = vmatprep.subr.mxu0 0.0
    %1226 = vmatpush2.msra.mxu0 0.0
    %1227 = vmatprep.subr.mxu0 0.0
    %1228 = vmatpush2.msra.mxu0 0.0
    %1229 = vmatprep.mubr.f32.mxu0 0.0
    %1230 = vmatmul.mubr.f32.gmra.mxu0 %v1163
    %v1231 = vpop.f32.mrf.mxu0
    %v1232 = vadd.f32 0.0, %v1231
    %v1233 = vpop.f32.mrf.mxu0
    %v1234 = vadd.f32 0.0, %v1233
    %1235 = vdwg.mxu0
    %v1238 = vcombine.low %v1232, %v1234
    %v1240 = vunpack.c.l.s4 1966171168
    %v1241 = vunpack.c.0.s8 %v1240
    %v1242 = vlaneseq
    %v1243 = vshrl.u32 %v1242, 7
    %v1244 = vsub.s32 %v1241, %v1243
    %v1245 = vrot.slane %v1238, %v1244
    %v1247 = vunpack.c.l.s4 1966171168
    %v1248 = vunpack.c.0.s8 %v1247
    %v1249 = vlaneseq
    %v1250 = vshrl.u32 %v1249, 7
    %v1251 = vsub.s32 %v1248, %v1250
    %v1252 = vrot.slane %v1245, %v1251
    %v1254 = vadd.f32 %v1145, %v1252
    %v1255 = vxor.u32 %v1254, 2147483648
    %v1256 = vmul.f32 %v1255, 1.442695
    %v1257 = vpow.pop %v1256
    %v1258 = vadd.f32 %v1257, 1.0
    %v1259 = vrcp.pop %v1258
    %v1260 = vmul.f32 1.0, %v1259
    %1262 = vrot.lane.b32.xlu0 %v1254, 64
    %v1263 = vpop.permute.xlu0 %1262
    %v1264 = vrot.slane %v1263, 1
    %v1266 = vtanh.pop %v1264
    %v1267 = vmul.f32 %v1260, %v1132
    %v1268 = vmul.f32 %v1260, %v1266
    %1270 = vrot.lane.b32.xlu0 %v1268, 64
    %v1271 = vpop.permute.xlu0 %1270
    %v1273 = vadd.f32 %v1267, %v1271
    %v1274 = vtanh.pop %v1273
    %v1276 = vrot.slane %v1260, 1
    %1279 = vrot.lane.b32.xlu0 %v1274, 64
    %v1280 = vpop.permute.xlu0 %1279
    %v1282 = vmul.f32 %v1276, %v1280
    %1283 = vst.msk [vmem:[#allocation3 + $0x7] sm:$0x1] %vm294, %v1282
    %1284 = vst.msk [vmem:[#allocation3] sm:$0x1] %vm296, %v1282
    %v1285 = vld [vmem:[#allocation3] sm:$0xff]
    %v1286 = vld [vmem:[%s6] sm:$0xff]
    %v1287 = vld [vmem:[%s6 + $0x8] sm:$0xff]
    %v1288 = vld [vmem:[%s6 + $0x10] sm:$0xff]
    %v1289 = vld [vmem:[%s6 + $0x18] sm:$0xff]
    %v1290 = vld [vmem:[%s6 + $0x20] sm:$0xff]
    %v1291 = vld [vmem:[%s6 + $0x28] sm:$0xff]
    %v1292 = vld [vmem:[%s6 + $0x30] sm:$0xff]
    %v1293 = vld [vmem:[%s6 + $0x38] sm:$0xff]
    %v1294 = vld [vmem:[%s7] sm:$0x1]
    %v1296 = vlaneseq
    %v1297 = vshrl.u32 %v1296, 7
    %v1298 = vsub.s32 0, %v1297
    %v1299 = vrot.slane %v1294, %v1298
    %v1302 = vsel %vm168, %v1285, 0
    %1304 = vmatprep.subr.mxu0 0.0
    %1305 = vmatpush1.msra.mxu0 0.0
    %1306 = vmatprep.subr.mxu0 0.0
    %1307 = vmatpush1.msra.mxu0 0.0
    %1308 = vmatprep.subr.mxu0 0.0
    %1309 = vmatpush1.msra.mxu0 0.0
    %1310 = vmatprep.subr.mxu0 0.0
    %1311 = vmatpush1.msra.mxu0 0.0
    %1312 = vmatprep.subr.mxu0 0.0
    %1313 = vmatpush1.msra.mxu0 0.0
    %1314 = vmatprep.subr.mxu0 0.0
    %1315 = vmatpush1.msra.mxu0 0.0
    %1316 = vmatprep.subr.mxu0 0.0
    %1317 = vmatpush1.msra.mxu0 0.0
    %1318 = vmatprep.subr.mxu0 0.0
    %1319 = vmatpush1.msra.mxu0 0.0
    %1320 = vmatprep.subr.mxu0 0.0
    %1321 = vmatpush1.msra.mxu0 %v1293
    %1322 = vmatprep.subr.mxu0 0.0
    %1323 = vmatpush1.msra.mxu0 %v1292
    %1324 = vmatprep.subr.mxu0 0.0
    %1325 = vmatpush1.msra.mxu0 %v1291
    %1326 = vmatprep.subr.mxu0 0.0
    %1327 = vmatpush1.msra.mxu0 %v1290
    %1328 = vmatprep.subr.mxu0 0.0
    %1329 = vmatpush1.msra.mxu0 %v1289
    %1330 = vmatprep.subr.mxu0 0.0
    %1331 = vmatpush1.msra.mxu0 %v1288
    %1332 = vmatprep.subr.mxu0 0.0
    %1333 = vmatpush1.msra.mxu0 %v1287
    %1334 = vmatprep.subr.mxu0 0.0
    %1335 = vmatpush1.msra.mxu0 %v1286
    %1336 = vmatprep.subr.mxu0 0.0
    %1337 = vmatpush2.msra.mxu0 0.0
    %1338 = vmatprep.subr.mxu0 0.0
    %1339 = vmatpush2.msra.mxu0 0.0
    %1340 = vmatprep.subr.mxu0 0.0
    %1341 = vmatpush2.msra.mxu0 0.0
    %1342 = vmatprep.subr.mxu0 0.0
    %1343 = vmatpush2.msra.mxu0 0.0
    %1344 = vmatprep.subr.mxu0 0.0
    %1345 = vmatpush2.msra.mxu0 0.0
    %1346 = vmatprep.subr.mxu0 0.0
    %1347 = vmatpush2.msra.mxu0 0.0
    %1348 = vmatprep.subr.mxu0 0.0
    %1349 = vmatpush2.msra.mxu0 0.0
    %1350 = vmatprep.subr.mxu0 0.0
    %1351 = vmatpush2.msra.mxu0 0.0
    %1352 = vmatprep.subr.mxu0 0.0
    %1353 = vmatpush2.msra.mxu0 0.0
    %1354 = vmatprep.subr.mxu0 0.0
    %1355 = vmatpush2.msra.mxu0 0.0
    %1356 = vmatprep.subr.mxu0 0.0
    %1357 = vmatpush2.msra.mxu0 0.0
    %1358 = vmatprep.subr.mxu0 0.0
    %1359 = vmatpush2.msra.mxu0 0.0
    %1360 = vmatprep.subr.mxu0 0.0
    %1361 = vmatpush2.msra.mxu0 0.0
    %1362 = vmatprep.subr.mxu0 0.0
    %1363 = vmatpush2.msra.mxu0 0.0
    %1364 = vmatprep.subr.mxu0 0.0
    %1365 = vmatpush2.msra.mxu0 0.0
    %1366 = vmatprep.subr.mxu0 0.0
    %1367 = vmatpush2.msra.mxu0 0.0
    %1368 = vmatprep.mubr.f32.mxu0 0.0
    %1369 = vmatmul.mubr.f32.gmra.mxu0 %v1302
    %v1370 = vpop.f32.mrf.mxu0
    %v1371 = vadd.f32 %v1299, %v1370
    %v1372 = vpop.f32.mrf.mxu0
    %1373 = vdwg.mxu0
    %v1374 = vtanh.pop %v1371
    %v1375 = vld [vmem:[%s8] sm:$0x1]
    %v1377 = vlaneseq
    %v1378 = vshrl.u32 %v1377, 7
    %v1379 = vsub.s32 0, %v1378
    %v1380 = vrot.slane %v1375, %v1379
    %v1382 = vmul.f32 %v1374, %v1380
    %vm1383 = vcmask 130048
    %v1384 = vsel %vm1383, %v1382, 0.0
    %1385 = vadd.xlane.f32.xlu0 %v1384
    %v1386 = vpop.xlane.xlu0 %1385
    %v1387 = vld [vmem:[#allocation4] sm:$0x1]
    %v1389 = vlaneseq
    %v1390 = vshrl.u32 %v1389, 7
    %v1391 = vsub.s32 0, %v1390
    %v1392 = vrot.slane %v1387, %v1391
    %v1394 = vadd.f32 %v1386, %v1392
    %vm1395 = vcmask 7168
    %v1396 = vsel %vm1395, %v1394, -inf
    %v1397 = vrot.slane %v1396, 4
    %v1398 = vmax.f32 %v1396, %v1397
    %v1399 = vrot.slane %v1398, 2
    %v1400 = vmax.f32 %v1398, %v1399
    %v1401 = vrot.slane %v1400, 1
    %v1402 = vmax.f32 %v1400, %v1401
    %v1403 = vsub.f32 %v1394, %v1402
    %v1404 = vmul.f32 %v1403, 1.442695
    %v1405 = vpow.pop %v1404
    %v1406 = vsel %vm1395, %v1405, 0.0
    %v1407 = vrot.slane %v1406, 4
    %v1408 = vadd.f32 %v1406, %v1407
    %v1409 = vrot.slane %v1408, 2
    %v1410 = vadd.f32 %v1408, %v1409
    %v1411 = vrot.slane %v1410, 1
    %v1412 = vadd.f32 %v1410, %v1411
    %v1413 = vrcp.pop %v1412
    %v1414 = vmul.f32 %v1405, %v1413
    %1415 = vst.msk [vmem:[%s10] sm:$0xff] %vm1395, %v1414
    // Predicated region
    $region46: #{tpu_custom_call.1} parent=1 // pred_check
      _
    $region47: #{tpu_custom_call.1} parent=1 // pred_check_branch
      %1417 = sbr.rel (0) target = $region49
    $region48: #{tpu_custom_call.1} parent=1 // pred_region
      _
    $region49: #{tpu_custom_call.1} parent=1 // pred_fallthru
      _
    // Predicated region
    $region50: #{tpu_custom_call.1} parent=1 // pred_check
      _
    $region51: #{tpu_custom_call.1} parent=1 // pred_check_branch
      %1419 = sbr.rel (0) target = $region53
    $region52: #{tpu_custom_call.1} parent=1 // pred_region
      _
    $region53: #{tpu_custom_call.1} parent=1 // pred_fallthru
      _
    %1420 = vsyncpa [#allocation6], 1

</llo_original>
